<compile_context>
chip_gen: v5e
topology: v5e:2x2
jax: 0.10.0
libtpu: 0.0.40
codegen_flags: <defaults>
</compile_context>

<pallas_src>
import functools
import math

import jax
import jax.numpy as jnp
from jax import lax
from jax.experimental import pallas as pl
from jax.experimental.pallas import tpu as pltpu

_NP_RATIO = 3
_LANE = 128
_SUBLANE = 8
_FLT_BITS_HI = 0x7F800001   # one past the bit pattern of +inf (losses are finite, >= 0)


def _recip(x):
    # EUP slot (otherwise idle) instead of the VALU slot that the mask math uses.
    return pl.reciprocal(x, approx=True)


def _atan_f32(v):
    """Cephes-style float32 arctangent built from elementwise ops only."""
    # TODO(synk): swap to jnp.arctan if/when lax.atan has a guaranteed Mosaic lowering.
    sign = jnp.where(v < 0.0, jnp.float32(-1.0), jnp.float32(1.0))
    x = jnp.abs(v)
    big = x > 2.414213562373095                                   # tan(3*pi/8)
    mid = jnp.logical_and(x > 0.4142135623730950, jnp.logical_not(big))  # tan(pi/8)
    y0 = jnp.where(big, jnp.float32(math.pi / 2.0),
                   jnp.where(mid, jnp.float32(math.pi / 4.0), jnp.float32(0.0)))
    x_big_safe = jnp.where(big, x, jnp.float32(1.0))
    xr = jnp.where(big, -_recip(x_big_safe),
                   jnp.where(mid, (x - 1.0) * _recip(x + 1.0), x))
    z = xr * xr
    poly = ((8.05374449538e-2 * z - 1.38776856032e-1) * z
            + 1.99777106478e-1) * z - 3.33329491539e-1
    return sign * (y0 + poly * z * xr + xr)


def _cart2polar(x, y):
    theta = _atan_f32(y * _recip(x + 1e-12))
    theta = theta + (x < 0).astype(jnp.float32) * math.pi
    theta = theta + ((x > 0).astype(jnp.float32)
                     * (y < 0).astype(jnp.float32) * (2.0 * math.pi))
    return theta * jnp.float32(1.0 / (2.0 * math.pi))


# --------------------------------------------------------------------------- #
# Pass 1: tiled/pipelined elementwise pass over HW blocks.
# --------------------------------------------------------------------------- #
def _pass1_kernel(px_ref, py_ref, gx_ref, gy_ref, w_ref,
                  bits_ref, termpix_ref, pos_ref, neg_ref, tw_ref, wsum_ref):
    @pl.when(pl.program_id(0) == 0)
    def _init():
        pos_ref[...] = jnp.zeros_like(pos_ref)
        neg_ref[...] = jnp.zeros_like(neg_ref)
        tw_ref[...] = jnp.zeros_like(tw_ref)
        wsum_ref[...] = jnp.zeros_like(wsum_ref)

    px = px_ref[...]
    py = py_ref[...]
    gx = gx_ref[...]
    gy = gy_ref[...]
    w = w_ref[...]

    dx = px - gx
    dy = py - gy
    dist = dx * dx + dy * dy                                     # distL2[:,0]+distL2[:,1]
    ang = _cart2polar(gx, gy) - _cart2polar(px, py)              # angleDistL1
    term = dist + ang * ang                                      # (N, TR, 128)

    region_pos = (w > 0).astype(jnp.float32)
    # kept as an exact (w == 0) test (not 1 - region_pos) so arbitrary
    # user-supplied weights (possibly negative) keep torch semantics.
    region_neg = (w == 0).astype(jnp.float32)

    loss_neg = term * region_neg                                 # >= 0
    # Nonnegative f32 bit patterns order like the values; pass 2 ranks in bit space.
    bits_ref[...] = pltpu.bitcast(loss_neg, jnp.int32)
    termpix_ref[...] = jnp.sum(term, axis=0)                     # sum over samples

    # lane-partial per-sample statistics (fully reduced in pass 2)
    pos_ref[...] += jnp.sum(region_pos, axis=1, keepdims=True)   # sumPos
    neg_ref[...] += jnp.sum(region_neg, axis=1, keepdims=True)   # sumNeg
    tw_ref[...] += jnp.sum(term * w, axis=1, keepdims=True)      # sum(term * weightPos)
    wsum_ref[...] += jnp.sum(w, axis=1, keepdims=True)           # sum(weightPos)


# --------------------------------------------------------------------------- #
# Pass 2: OHEM threshold search (binary search in bit space) + final reduction.
# --------------------------------------------------------------------------- #
def _pass2_kernel(bits_ref, termpix_ref, pos_ref, neg_ref, tw_ref, wsum_ref,
                  out_ref, *, n, rows, hw_pad, np_ratio):
    def per_sample_sum(x):                                       # (N,R,128) -> (N,1,1)
        return jnp.sum(jnp.sum(x, axis=2, keepdims=True), axis=1, keepdims=True)

    sum_pos = jnp.sum(pos_ref[...], axis=2, keepdims=True)       # (N,1,1)
    sum_neg = jnp.sum(neg_ref[...], axis=2, keepdims=True)       # (N,1,1)
    sum_tw = jnp.sum(tw_ref[...])                                # scalar sum(term*wPos)
    sum_w = jnp.sum(wsum_ref[...])                               # scalar sum(wPos)

    # sumhardNeg (integral float32; exact while hw_pad < 2**24)
    k = jnp.minimum(np_ratio * sum_pos, sum_neg)                 # (N,1,1)
    kk = jnp.maximum(k, 1.0)                                     # k==0 quirk handled below

    def count_ge(th):                                            # th: (N,1,1) int32
        return per_sample_sum((bits_ref[...] >= th).astype(jnp.float32))

    # --- value-level threshold: bit pattern of the kk-th largest loss per sample
    lo = jnp.zeros((n, 1, 1), jnp.int32)
    hi = jnp.full((n, 1, 1), _FLT_BITS_HI, jnp.int32)

    def value_step(_, carry):
        lo_c, hi_c = carry
        mid = lo_c + ((hi_c - lo_c) >> 1)
        ge = count_ge(mid) >= kk
        return jnp.where(ge, mid, lo_c), jnp.where(ge, hi_c, mid)

    lo, hi = lax.fori_loop(0, 32, value_step, (lo, hi))
    thr = lo                                                     # (N,1,1)

    c_gt = count_ge(thr + 1)                                     # strictly-greater count
    need_eq = kk - c_gt                                          # equals to keep (>= 1)

    # --- index-level threshold among equal-valued losses (stable tie-break:
    #     torch's ascending argsort zeroes lower flat indices first)
    ridx = lax.broadcasted_iota(jnp.int32, (rows, _LANE), 0)
    lidx = lax.broadcasted_iota(jnp.int32, (rows, _LANE), 1)
    flat_idx = ridx * _LANE + lidx                               # (R,128)

    def count_eq_ge(tidx):                                       # tidx: (N,1,1) int32
        m = jnp.logical_and(bits_ref[...] == thr, flat_idx >= tidx)
        return per_sample_sum(m.astype(jnp.float32))

    lo2 = jnp.zeros((n, 1, 1), jnp.int32)
    hi2 = jnp.full((n, 1, 1), hw_pad, jnp.int32)

    def index_step(_, carry):
        lo_c, hi_c = carry
        mid = lo_c + ((hi_c - lo_c) >> 1)
        ge = count_eq_ge(mid) >= need_eq
        return jnp.where(ge, mid, lo_c), jnp.where(ge, hi_c, mid)

    idx_iters = max(1, int(hw_pad).bit_length())
    lo2, hi2 = lax.fori_loop(0, idx_iters, index_step, (lo2, hi2))
    idx_thr = lo2

    bits = bits_ref[...]                                         # (N,R,128)
    kept = jnp.logical_or(bits > thr,
                          jnp.logical_and(bits == thr, flat_idx >= idx_thr))
    kept = jnp.logical_or(kept, k <= 0.0)     # torch `arg[i, :-0]` quirk: zero nothing
    wn = jnp.logical_and(kept, bits != 0).astype(jnp.float32)    # weightNeg per sample

    # torch broadcast quirk: (N,H,W) weightPos + (N,1,H,W) weightNeg -> (N,N,H,W)
    #   sum(term * (wp + wn)) = N*sum(term*wp) + sum_p[(sum_b term) * (sum_a wn)]
    #   sum(wp + wn)          = N*(sum(wp) + sum(wn))
    wn_pix = jnp.sum(wn, axis=0)                                 # (R,128)
    cross = jnp.sum(termpix_ref[...] * wn_pix)
    sum_wn = jnp.sum(wn)

    numerator = n * sum_tw + cross
    denominator = n * (sum_w + sum_wn)
    out_ref[0, 0] = numerator / n / 2.0 / denominator


# --------------------------------------------------------------------------- #
# Glue (plain JAX, jittable)
# --------------------------------------------------------------------------- #
def _cal_weight(gt_i, max_label):
    """Jittable port of EuclideanAngleLossWithOHEM.__cal_weight (glue, not a kernel).

    Assumes integer-valued labels in [0, max_label] with 0 = background (the
    label that torch.unique(...)[1:] drops)."""
    # TODO(synk): labels outside 1..max_label (or a non-zero smallest label) follow
    # torch's data-dependent unique() path and are not reproduced here.
    g0 = gt_i[0].astype(jnp.float32)                             # (H, W)
    labels = jnp.arange(1, max_label + 1, dtype=jnp.float32)
    overlap = g0[None, :, :] == labels[:, None, None]            # (L, H, W)
    cnt = jnp.sum(overlap.astype(jnp.float32), axis=(1, 2))      # (L,)
    pos_count = jnp.sum((g0 > 0).astype(jnp.float32))
    seg_remain = jnp.sum((cnt > 0).astype(jnp.float32))
    seg_ave = pos_count / jnp.maximum(seg_remain, 1.0)
    pix_ave = jnp.where(cnt > 0, seg_ave / jnp.maximum(cnt, 1.0), 0.0)
    weight = jnp.sum(overlap.astype(jnp.float32) * pix_ave[:, None, None], axis=0)
    return jnp.where(pos_count > 0, weight, jnp.ones_like(weight))


def _vmem_limit(resident_bytes):
    # generous headroom; clamp so the request stays within v7x's 64 MiB physical VMEM
    return int(min(max(4 * resident_bytes, 32 << 20), 64 << 20))


def euclidean_angle_loss_with_ohem(pred, gt_df, gt, weight=None,
                                   np_ratio=_NP_RATIO, max_label=8):
    """pred, gt_df: (N, 2, H, W); gt: (N, 1, H, W); returns scalar float32 loss."""
    N, C, H, W = pred.shape
    assert C == 2, "cart2polar expects 2 channels (x, y)"
    hw = H * W

    if weight is None:
        weight = jax.vmap(functools.partial(_cal_weight, max_label=max_label))(gt)

    # lane-dense repack: (N, H, W) -> (N, HW_pad/128, 128), zero padded.
    # Padded pixels have weight 0 and loss 0, which leaves the loss unchanged
    # (they never enter weightNeg and contribute 0 to every sum).
    tile_rows = 64 if hw >= 64 * _LANE else _SUBLANE
    tile_px = tile_rows * _LANE
    hw_pad = ((hw + tile_px - 1) // tile_px) * tile_px
    rows = hw_pad // _LANE
    if hw_pad >= (1 << 24):
        raise ValueError("HW too large for exact float32 counting in OHEM selection")

    def repack(x):
        x = x.reshape(N, hw).astype(jnp.float32)
        if hw_pad != hw:
            x = jnp.pad(x, ((0, 0), (0, hw_pad - hw)))
        return x.reshape(N, rows, _LANE)

    px = repack(pred[:, 0])
    py = repack(pred[:, 1])
    gx = repack(gt_df[:, 0])
    gy = repack(gt_df[:, 1])
    wf = repack(weight)

    grid = (rows // tile_rows,)
    blk = (N, tile_rows, _LANE)
    acc_shape = (N, 1, _LANE)
    block_bytes = N * tile_rows * _LANE * 4
    p1_resident = 2 * 7 * block_bytes + 8 * N * _LANE * 4

    acc_spec = pl.BlockSpec(acc_shape, lambda r: (0, 0, 0))      # resident accumulator
    bits, termpix, acc_pos, acc_neg, acc_tw, acc_w = pl.pallas_call(
        _pass1_kernel,
        grid=grid,
        in_specs=[pl.BlockSpec(blk, lambda r: (0, r, 0))] * 5,
        out_specs=[
            pl.BlockSpec(blk, lambda r: (0, r, 0)),
            pl.BlockSpec((tile_rows, _LANE), lambda r: (r, 0)),
            acc_spec, acc_spec, acc_spec, acc_spec,
        ],
        out_shape=[
            jax.ShapeDtypeStruct((N, rows, _LANE), jnp.int32),    # loss bit patterns
            jax.ShapeDtypeStruct((rows, _LANE), jnp.float32),     # sum_b term
            jax.ShapeDtypeStruct(acc_shape, jnp.float32),         # sumPos partials
            jax.ShapeDtypeStruct(acc_shape, jnp.float32),         # sumNeg partials
            jax.ShapeDtypeStruct(acc_shape, jnp.float32),         # sum(term*w) partials
            jax.ShapeDtypeStruct(acc_shape, jnp.float32),         # sum(w) partials
        ],
        compiler_params=pltpu.CompilerParams(
            dimension_semantics=("arbitrary",),
            vmem_limit_bytes=_vmem_limit(p1_resident)),
    )(px, py, gx, gy, wf)

    # TODO(synk): for HW beyond a few Mpix, tile pass 2 as well (per-tile bit
    # histograms instead of whole-array VMEM residency for the threshold search).
    p2_resident = 6 * (N + 1) * rows * _LANE * 4
    out = pl.pallas_call(
        functools.partial(_pass2_kernel, n=N, rows=rows, hw_pad=hw_pad,
                          np_ratio=np_ratio),
        out_shape=jax.ShapeDtypeStruct((1, 1), jnp.float32),
        in_specs=[pl.BlockSpec(memory_space=pltpu.MemorySpace.VMEM)] * 6,
        out_specs=pl.BlockSpec(memory_space=pltpu.MemorySpace.SMEM),
        compiler_params=pltpu.CompilerParams(
            vmem_limit_bytes=_vmem_limit(p2_resident)),
    )(bits, termpix, acc_pos, acc_neg, acc_tw, acc_w)
    return out[0, 0]


# --------------------------------------------------------------------------- #
# Plain-JAX transcription of the torch module, for a loose sanity check only.
# --------------------------------------------------------------------------- #
def _reference_loss(pred, gt_df, gt, weight, np_ratio):
    N, _, H, W = pred.shape
    hw = H * W

    def c2p(c):
        x = c[:, 0]
        y = c[:, 1]
        th = jnp.arctan(y / (x + 1e-12))
        th = th + (x < 0).astype(jnp.float32) * math.pi
        th = th + (x > 0).astype(jnp.float32) * (y < 0).astype(jnp.float32) * 2.0 * math.pi
        return th / (2.0 * math.pi)

    dist_l2 = (pred - gt_df) ** 2
    angle = c2p(gt_df) - c2p(pred)
    term = dist_l2[:, 0] + dist_l2[:, 1] + angle ** 2            # (N,H,W)

    region_pos = (weight > 0).astype(jnp.float32)
    region_neg = (weight == 0).astype(jnp.float32)
    sum_pos = jnp.sum(region_pos, axis=(1, 2))
    sum_neg = jnp.sum(region_neg, axis=(1, 2))
    k = jnp.minimum(np_ratio * sum_pos, sum_neg).astype(jnp.int32)

    loss_flat = (term * region_neg).reshape(N, hw)
    order = jnp.argsort(loss_flat, axis=1)                       # stable ascending
    ranks = jnp.argsort(order, axis=1)                           # stable-ascending rank
    kept = ranks >= (hw - k)[:, None]
    kept = jnp.where((k > 0)[:, None], kept, True)               # torch `:-0` quirk
    loss_hard = loss_flat * kept

    wp = weight                                                  # (N,H,W)
    wn = (loss_hard != 0).astype(jnp.float32).reshape(N, 1, H, W)
    wsum = wp + wn                                               # (N,N,H,W) quirk
    return jnp.sum(term * wsum) / N / 2.0 / jnp.sum(wsum)


if __name__ == "__main__":
    key = jax.random.PRNGKey(0)
    N, C, H, W = 2, 2, 16, 16
    k1, k2, k3 = jax.random.split(key, 3)
    pred = jax.random.normal(k1, (N, C, H, W), dtype=jnp.float32)
    gt_df = jax.random.normal(k2, (N, C, H, W), dtype=jnp.float32)
    # synthetic segmentation labels in {0,1,2,3}; label 0 = background
    gt = jax.random.randint(k3, (N, 1, H, W), 0, 4).astype(jnp.float32)

    loss_fn = jax.jit(functools.partial(euclidean_angle_loss_with_ohem,
                                        np_ratio=_NP_RATIO, max_label=4))
    loss = jax.block_until_ready(loss_fn(pred, gt_df, gt))       # weight=None path

    # sanity check vs. plain-JAX reference (loose tolerance: in-kernel atan
    # polynomial + EUP approx reciprocal)
    weight = jax.vmap(functools.partial(_cal_weight, max_label=4))(gt)
    ref = float(_reference_loss(pred, gt_df, gt, weight, _NP_RATIO))
    assert abs(float(loss) - ref) <= 2e-2 * max(abs(ref), 1e-3), (float(loss), ref)

    print("KERNEL_OK")
</pallas_src>

<mosaic_0001>
module attributes {stable_mosaic.version = 11 : i64} {
  func.func @_pass1_kernel(%arg0: i32, %arg1: memref<2x8x128xf32, #tpu.memory_space<vmem>>, %arg2: memref<2x8x128xf32, #tpu.memory_space<vmem>>, %arg3: memref<2x8x128xf32, #tpu.memory_space<vmem>>, %arg4: memref<2x8x128xf32, #tpu.memory_space<vmem>>, %arg5: memref<2x8x128xf32, #tpu.memory_space<vmem>>, %arg6: memref<2x8x128xi32, #tpu.memory_space<vmem>>, %arg7: memref<8x128xf32, #tpu.memory_space<vmem>>, %arg8: memref<2x1x128xf32, #tpu.memory_space<vmem>>, %arg9: memref<2x1x128xf32, #tpu.memory_space<vmem>>, %arg10: memref<2x1x128xf32, #tpu.memory_space<vmem>>, %arg11: memref<2x1x128xf32, #tpu.memory_space<vmem>>) attributes {dimension_semantics = [#tpu.dimension_semantics<arbitrary>], iteration_bounds = array<i64: 1>, scalar_prefetch = 0 : i64, scratch_operands = 0 : i64, tpu.core_type = #tpu.core_type<tc>, window_params = [{transform_indices = @transform_0, window_bounds = array<i64: 2, 8, 128>}, {transform_indices = @transform_1, window_bounds = array<i64: 2, 8, 128>}, {transform_indices = @transform_2, window_bounds = array<i64: 2, 8, 128>}, {transform_indices = @transform_3, window_bounds = array<i64: 2, 8, 128>}, {transform_indices = @transform_4, window_bounds = array<i64: 2, 8, 128>}, {transform_indices = @transform_5, window_bounds = array<i64: 2, 8, 128>}, {transform_indices = @transform_6, window_bounds = array<i64: 8, 128>}, {pipeline_mode = #tpu.pipeline_mode<synchronous>, transform_indices = @transform_7, window_bounds = array<i64: 2, 1, 128>}, {pipeline_mode = #tpu.pipeline_mode<synchronous>, transform_indices = @transform_8, window_bounds = array<i64: 2, 1, 128>}, {pipeline_mode = #tpu.pipeline_mode<synchronous>, transform_indices = @transform_9, window_bounds = array<i64: 2, 1, 128>}, {pipeline_mode = #tpu.pipeline_mode<synchronous>, transform_indices = @transform_10, window_bounds = array<i64: 2, 1, 128>}]} {
    %c0_i32 = arith.constant 0 : i32
    %0 = arith.cmpi eq, %arg0, %c0_i32 : i32
    %1 = arith.extui %0 : i1 to i32
    %c0_i32_0 = arith.constant 0 : i32
    %2 = arith.cmpi ne, %1, %c0_i32_0 : i32
    scf.if %2 {
      %cst_98 = arith.constant 0.000000e+00 : f32
      %192 = vector.broadcast %cst_98 : f32 to vector<2x1x128xf32>
      %c0_99 = arith.constant 0 : index
      %c0_100 = arith.constant 0 : index
      %c0_101 = arith.constant 0 : index
      %193 = vector.load %arg8[%c0_99, %c0_100, %c0_101] : memref<2x1x128xf32, #tpu.memory_space<vmem>>, vector<2x1x128xf32>
      tpu.vector_store %arg8[%c0_99, %c0_100, %c0_101], %192 {strides = array<i32>} : memref<2x1x128xf32, #tpu.memory_space<vmem>>, vector<2x1x128xf32>,
      %cst_102 = arith.constant 0.000000e+00 : f32
      %194 = vector.broadcast %cst_102 : f32 to vector<2x1x128xf32>
      %c0_103 = arith.constant 0 : index
      %c0_104 = arith.constant 0 : index
      %c0_105 = arith.constant 0 : index
      %195 = vector.load %arg9[%c0_103, %c0_104, %c0_105] : memref<2x1x128xf32, #tpu.memory_space<vmem>>, vector<2x1x128xf32>
      tpu.vector_store %arg9[%c0_103, %c0_104, %c0_105], %194 {strides = array<i32>} : memref<2x1x128xf32, #tpu.memory_space<vmem>>, vector<2x1x128xf32>,
      %cst_106 = arith.constant 0.000000e+00 : f32
      %196 = vector.broadcast %cst_106 : f32 to vector<2x1x128xf32>
      %c0_107 = arith.constant 0 : index
      %c0_108 = arith.constant 0 : index
      %c0_109 = arith.constant 0 : index
      %197 = vector.load %arg10[%c0_107, %c0_108, %c0_109] : memref<2x1x128xf32, #tpu.memory_space<vmem>>, vector<2x1x128xf32>
      tpu.vector_store %arg10[%c0_107, %c0_108, %c0_109], %196 {strides = array<i32>} : memref<2x1x128xf32, #tpu.memory_space<vmem>>, vector<2x1x128xf32>,
      %cst_110 = arith.constant 0.000000e+00 : f32
      %198 = vector.broadcast %cst_110 : f32 to vector<2x1x128xf32>
      %c0_111 = arith.constant 0 : index
      %c0_112 = arith.constant 0 : index
      %c0_113 = arith.constant 0 : index
      %199 = vector.load %arg11[%c0_111, %c0_112, %c0_113] : memref<2x1x128xf32, #tpu.memory_space<vmem>>, vector<2x1x128xf32>
      tpu.vector_store %arg11[%c0_111, %c0_112, %c0_113], %198 {strides = array<i32>} : memref<2x1x128xf32, #tpu.memory_space<vmem>>, vector<2x1x128xf32>,
    } else {
    }
    %c0 = arith.constant 0 : index
    %c0_1 = arith.constant 0 : index
    %c0_2 = arith.constant 0 : index
    %3 = vector.load %arg1[%c0, %c0_1, %c0_2] : memref<2x8x128xf32, #tpu.memory_space<vmem>>, vector<2x8x128xf32>
    %c0_3 = arith.constant 0 : index
    %c0_4 = arith.constant 0 : index
    %c0_5 = arith.constant 0 : index
    %4 = vector.load %arg2[%c0_3, %c0_4, %c0_5] : memref<2x8x128xf32, #tpu.memory_space<vmem>>, vector<2x8x128xf32>
    %c0_6 = arith.constant 0 : index
    %c0_7 = arith.constant 0 : index
    %c0_8 = arith.constant 0 : index
    %5 = vector.load %arg3[%c0_6, %c0_7, %c0_8] : memref<2x8x128xf32, #tpu.memory_space<vmem>>, vector<2x8x128xf32>
    %c0_9 = arith.constant 0 : index
    %c0_10 = arith.constant 0 : index
    %c0_11 = arith.constant 0 : index
    %6 = vector.load %arg4[%c0_9, %c0_10, %c0_11] : memref<2x8x128xf32, #tpu.memory_space<vmem>>, vector<2x8x128xf32>
    %c0_12 = arith.constant 0 : index
    %c0_13 = arith.constant 0 : index
    %c0_14 = arith.constant 0 : index
    %7 = vector.load %arg5[%c0_12, %c0_13, %c0_14] : memref<2x8x128xf32, #tpu.memory_space<vmem>>, vector<2x8x128xf32>
    %8 = arith.subf %3, %5 : vector<2x8x128xf32>
    %9 = arith.subf %4, %6 : vector<2x8x128xf32>
    %10 = arith.mulf %8, %8 : vector<2x8x128xf32>
    %11 = arith.mulf %9, %9 : vector<2x8x128xf32>
    %12 = arith.addf %10, %11 : vector<2x8x128xf32>
    %cst = arith.constant 9.99999996E-13 : f32
    %13 = vector.broadcast %cst : f32 to vector<2x8x128xf32>
    %14 = arith.addf %5, %13 : vector<2x8x128xf32>
    %15 = tpu.reciprocal %14 {approx = true} : vector<2x8x128xf32> -> vector<2x8x128xf32>
    %16 = arith.mulf %6, %15 : vector<2x8x128xf32>
    %cst_15 = arith.constant 0.000000e+00 : f32
    %17 = vector.broadcast %cst_15 : f32 to vector<2x8x128xf32>
    %18 = arith.cmpf olt, %16, %17 : vector<2x8x128xf32>
    %cst_16 = arith.constant -1.000000e+00 : f32
    %cst_17 = arith.constant 1.000000e+00 : f32
    %19 = vector.broadcast %cst_16 : f32 to vector<2x8x128xf32>
    %20 = vector.broadcast %cst_17 : f32 to vector<2x8x128xf32>
    %21 = arith.select %18, %19, %20 : vector<2x8x128xi1>, vector<2x8x128xf32>
    %22 = math.absf %16 : vector<2x8x128xf32>
    %cst_18 = arith.constant 2.41421366 : f32
    %23 = vector.broadcast %cst_18 : f32 to vector<2x8x128xf32>
    %24 = arith.cmpf ogt, %22, %23 : vector<2x8x128xf32>
    %cst_19 = arith.constant 0.414213568 : f32
    %25 = vector.broadcast %cst_19 : f32 to vector<2x8x128xf32>
    %26 = arith.cmpf ogt, %22, %25 : vector<2x8x128xf32>
    %cst_20 = arith.constant dense<true> : vector<2x8x128xi1>
    %27 = arith.xori %24, %cst_20 : vector<2x8x128xi1>
    %28 = arith.andi %26, %27 : vector<2x8x128xi1>
    %cst_21 = arith.constant 0.785398185 : f32
    %cst_22 = arith.constant 0.000000e+00 : f32
    %29 = vector.broadcast %cst_21 : f32 to vector<2x8x128xf32>
    %30 = vector.broadcast %cst_22 : f32 to vector<2x8x128xf32>
    %31 = arith.select %28, %29, %30 : vector<2x8x128xi1>, vector<2x8x128xf32>
    %cst_23 = arith.constant 1.57079637 : f32
    %32 = vector.broadcast %cst_23 : f32 to vector<2x8x128xf32>
    %33 = arith.select %24, %32, %31 : vector<2x8x128xi1>, vector<2x8x128xf32>
    %cst_24 = arith.constant 1.000000e+00 : f32
    %34 = vector.broadcast %cst_24 : f32 to vector<2x8x128xf32>
    %35 = arith.select %24, %22, %34 : vector<2x8x128xi1>, vector<2x8x128xf32>
    %36 = tpu.reciprocal %35 {approx = true} : vector<2x8x128xf32> -> vector<2x8x128xf32>
    %cst_25 = arith.constant 0.000000e+00 : f32
    %37 = vector.broadcast %cst_25 : f32 to vector<2x8x128xf32>
    %38 = arith.subf %37, %36 : vector<2x8x128xf32>
    %cst_26 = arith.constant 1.000000e+00 : f32
    %39 = vector.broadcast %cst_26 : f32 to vector<2x8x128xf32>
    %40 = arith.subf %22, %39 : vector<2x8x128xf32>
    %cst_27 = arith.constant 1.000000e+00 : f32
    %41 = vector.broadcast %cst_27 : f32 to vector<2x8x128xf32>
    %42 = arith.addf %22, %41 : vector<2x8x128xf32>
    %43 = tpu.reciprocal %42 {approx = true} : vector<2x8x128xf32> -> vector<2x8x128xf32>
    %44 = arith.mulf %40, %43 : vector<2x8x128xf32>
    %45 = arith.select %28, %44, %22 : vector<2x8x128xi1>, vector<2x8x128xf32>
    %46 = arith.select %24, %38, %45 : vector<2x8x128xi1>, vector<2x8x128xf32>
    %47 = arith.mulf %46, %46 : vector<2x8x128xf32>
    %cst_28 = arith.constant 0.0805374458 : f32
    %48 = vector.broadcast %cst_28 : f32 to vector<2x8x128xf32>
    %49 = arith.mulf %48, %47 : vector<2x8x128xf32>
    %cst_29 = arith.constant 0.138776854 : f32
    %50 = vector.broadcast %cst_29 : f32 to vector<2x8x128xf32>
    %51 = arith.subf %49, %50 : vector<2x8x128xf32>
    %52 = arith.mulf %51, %47 : vector<2x8x128xf32>
    %cst_30 = arith.constant 0.199777111 : f32
    %53 = vector.broadcast %cst_30 : f32 to vector<2x8x128xf32>
    %54 = arith.addf %52, %53 : vector<2x8x128xf32>
    %55 = arith.mulf %54, %47 : vector<2x8x128xf32>
    %cst_31 = arith.constant 0.333329499 : f32
    %56 = vector.broadcast %cst_31 : f32 to vector<2x8x128xf32>
    %57 = arith.subf %55, %56 : vector<2x8x128xf32>
    %58 = arith.mulf %57, %47 : vector<2x8x128xf32>
    %59 = arith.mulf %58, %46 : vector<2x8x128xf32>
    %60 = arith.addf %33, %59 : vector<2x8x128xf32>
    %61 = arith.addf %60, %46 : vector<2x8x128xf32>
    %62 = arith.mulf %21, %61 : vector<2x8x128xf32>
    %cst_32 = arith.constant 0.000000e+00 : f32
    %63 = vector.broadcast %cst_32 : f32 to vector<2x8x128xf32>
    %64 = arith.cmpf olt, %5, %63 : vector<2x8x128xf32>
    %65 = arith.extui %64 : vector<2x8x128xi1> to vector<2x8x128xi32>
    %66 = arith.sitofp %65 : vector<2x8x128xi32> to vector<2x8x128xf32>
    %cst_33 = arith.constant 3.14159274 : f32
    %67 = vector.broadcast %cst_33 : f32 to vector<2x8x128xf32>
    %68 = arith.mulf %66, %67 : vector<2x8x128xf32>
    %69 = arith.addf %62, %68 : vector<2x8x128xf32>
    %cst_34 = arith.constant 0.000000e+00 : f32
    %70 = vector.broadcast %cst_34 : f32 to vector<2x8x128xf32>
    %71 = arith.cmpf ogt, %5, %70 : vector<2x8x128xf32>
    %72 = arith.extui %71 : vector<2x8x128xi1> to vector<2x8x128xi32>
    %73 = arith.sitofp %72 : vector<2x8x128xi32> to vector<2x8x128xf32>
    %cst_35 = arith.constant 0.000000e+00 : f32
    %74 = vector.broadcast %cst_35 : f32 to vector<2x8x128xf32>
    %75 = arith.cmpf olt, %6, %74 : vector<2x8x128xf32>
    %76 = arith.extui %75 : vector<2x8x128xi1> to vector<2x8x128xi32>
    %77 = arith.sitofp %76 : vector<2x8x128xi32> to vector<2x8x128xf32>
    %78 = arith.mulf %73, %77 : vector<2x8x128xf32>
    %cst_36 = arith.constant 6.28318548 : f32
    %79 = vector.broadcast %cst_36 : f32 to vector<2x8x128xf32>
    %80 = arith.mulf %78, %79 : vector<2x8x128xf32>
    %81 = arith.addf %69, %80 : vector<2x8x128xf32>
    %cst_37 = arith.constant 0.159154937 : f32
    %82 = vector.broadcast %cst_37 : f32 to vector<2x8x128xf32>
    %83 = arith.mulf %81, %82 : vector<2x8x128xf32>
    %cst_38 = arith.constant 9.99999996E-13 : f32
    %84 = vector.broadcast %cst_38 : f32 to vector<2x8x128xf32>
    %85 = arith.addf %3, %84 : vector<2x8x128xf32>
    %86 = tpu.reciprocal %85 {approx = true} : vector<2x8x128xf32> -> vector<2x8x128xf32>
    %87 = arith.mulf %4, %86 : vector<2x8x128xf32>
    %cst_39 = arith.constant 0.000000e+00 : f32
    %88 = vector.broadcast %cst_39 : f32 to vector<2x8x128xf32>
    %89 = arith.cmpf olt, %87, %88 : vector<2x8x128xf32>
    %cst_40 = arith.constant -1.000000e+00 : f32
    %cst_41 = arith.constant 1.000000e+00 : f32
    %90 = vector.broadcast %cst_40 : f32 to vector<2x8x128xf32>
    %91 = vector.broadcast %cst_41 : f32 to vector<2x8x128xf32>
    %92 = arith.select %89, %90, %91 : vector<2x8x128xi1>, vector<2x8x128xf32>
    %93 = math.absf %87 : vector<2x8x128xf32>
    %cst_42 = arith.constant 2.41421366 : f32
    %94 = vector.broadcast %cst_42 : f32 to vector<2x8x128xf32>
    %95 = arith.cmpf ogt, %93, %94 : vector<2x8x128xf32>
    %cst_43 = arith.constant 0.414213568 : f32
    %96 = vector.broadcast %cst_43 : f32 to vector<2x8x128xf32>
    %97 = arith.cmpf ogt, %93, %96 : vector<2x8x128xf32>
    %cst_44 = arith.constant dense<true> : vector<2x8x128xi1>
    %98 = arith.xori %95, %cst_44 : vector<2x8x128xi1>
    %99 = arith.andi %97, %98 : vector<2x8x128xi1>
    %cst_45 = arith.constant 0.785398185 : f32
    %cst_46 = arith.constant 0.000000e+00 : f32
    %100 = vector.broadcast %cst_45 : f32 to vector<2x8x128xf32>
    %101 = vector.broadcast %cst_46 : f32 to vector<2x8x128xf32>
    %102 = arith.select %99, %100, %101 : vector<2x8x128xi1>, vector<2x8x128xf32>
    %cst_47 = arith.constant 1.57079637 : f32
    %103 = vector.broadcast %cst_47 : f32 to vector<2x8x128xf32>
    %104 = arith.select %95, %103, %102 : vector<2x8x128xi1>, vector<2x8x128xf32>
    %cst_48 = arith.constant 1.000000e+00 : f32
    %105 = vector.broadcast %cst_48 : f32 to vector<2x8x128xf32>
    %106 = arith.select %95, %93, %105 : vector<2x8x128xi1>, vector<2x8x128xf32>
    %107 = tpu.reciprocal %106 {approx = true} : vector<2x8x128xf32> -> vector<2x8x128xf32>
    %cst_49 = arith.constant 0.000000e+00 : f32
    %108 = vector.broadcast %cst_49 : f32 to vector<2x8x128xf32>
    %109 = arith.subf %108, %107 : vector<2x8x128xf32>
    %cst_50 = arith.constant 1.000000e+00 : f32
    %110 = vector.broadcast %cst_50 : f32 to vector<2x8x128xf32>
    %111 = arith.subf %93, %110 : vector<2x8x128xf32>
    %cst_51 = arith.constant 1.000000e+00 : f32
    %112 = vector.broadcast %cst_51 : f32 to vector<2x8x128xf32>
    %113 = arith.addf %93, %112 : vector<2x8x128xf32>
    %114 = tpu.reciprocal %113 {approx = true} : vector<2x8x128xf32> -> vector<2x8x128xf32>
    %115 = arith.mulf %111, %114 : vector<2x8x128xf32>
    %116 = arith.select %99, %115, %93 : vector<2x8x128xi1>, vector<2x8x128xf32>
    %117 = arith.select %95, %109, %116 : vector<2x8x128xi1>, vector<2x8x128xf32>
    %118 = arith.mulf %117, %117 : vector<2x8x128xf32>
    %cst_52 = arith.constant 0.0805374458 : f32
    %119 = vector.broadcast %cst_52 : f32 to vector<2x8x128xf32>
    %120 = arith.mulf %119, %118 : vector<2x8x128xf32>
    %cst_53 = arith.constant 0.138776854 : f32
    %121 = vector.broadcast %cst_53 : f32 to vector<2x8x128xf32>
    %122 = arith.subf %120, %121 : vector<2x8x128xf32>
    %123 = arith.mulf %122, %118 : vector<2x8x128xf32>
    %cst_54 = arith.constant 0.199777111 : f32
    %124 = vector.broadcast %cst_54 : f32 to vector<2x8x128xf32>
    %125 = arith.addf %123, %124 : vector<2x8x128xf32>
    %126 = arith.mulf %125, %118 : vector<2x8x128xf32>
    %cst_55 = arith.constant 0.333329499 : f32
    %127 = vector.broadcast %cst_55 : f32 to vector<2x8x128xf32>
    %128 = arith.subf %126, %127 : vector<2x8x128xf32>
    %129 = arith.mulf %128, %118 : vector<2x8x128xf32>
    %130 = arith.mulf %129, %117 : vector<2x8x128xf32>
    %131 = arith.addf %104, %130 : vector<2x8x128xf32>
    %132 = arith.addf %131, %117 : vector<2x8x128xf32>
    %133 = arith.mulf %92, %132 : vector<2x8x128xf32>
    %cst_56 = arith.constant 0.000000e+00 : f32
    %134 = vector.broadcast %cst_56 : f32 to vector<2x8x128xf32>
    %135 = arith.cmpf olt, %3, %134 : vector<2x8x128xf32>
    %136 = arith.extui %135 : vector<2x8x128xi1> to vector<2x8x128xi32>
    %137 = arith.sitofp %136 : vector<2x8x128xi32> to vector<2x8x128xf32>
    %cst_57 = arith.constant 3.14159274 : f32
    %138 = vector.broadcast %cst_57 : f32 to vector<2x8x128xf32>
    %139 = arith.mulf %137, %138 : vector<2x8x128xf32>
    %140 = arith.addf %133, %139 : vector<2x8x128xf32>
    %cst_58 = arith.constant 0.000000e+00 : f32
    %141 = vector.broadcast %cst_58 : f32 to vector<2x8x128xf32>
    %142 = arith.cmpf ogt, %3, %141 : vector<2x8x128xf32>
    %143 = arith.extui %142 : vector<2x8x128xi1> to vector<2x8x128xi32>
    %144 = arith.sitofp %143 : vector<2x8x128xi32> to vector<2x8x128xf32>
    %cst_59 = arith.constant 0.000000e+00 : f32
    %145 = vector.broadcast %cst_59 : f32 to vector<2x8x128xf32>
    %146 = arith.cmpf olt, %4, %145 : vector<2x8x128xf32>
    %147 = arith.extui %146 : vector<2x8x128xi1> to vector<2x8x128xi32>
    %148 = arith.sitofp %147 : vector<2x8x128xi32> to vector<2x8x128xf32>
    %149 = arith.mulf %144, %148 : vector<2x8x128xf32>
    %cst_60 = arith.constant 6.28318548 : f32
    %150 = vector.broadcast %cst_60 : f32 to vector<2x8x128xf32>
    %151 = arith.mulf %149, %150 : vector<2x8x128xf32>
    %152 = arith.addf %140, %151 : vector<2x8x128xf32>
    %cst_61 = arith.constant 0.159154937 : f32
    %153 = vector.broadcast %cst_61 : f32 to vector<2x8x128xf32>
    %154 = arith.mulf %152, %153 : vector<2x8x128xf32>
    %155 = arith.subf %83, %154 : vector<2x8x128xf32>
    %156 = arith.mulf %155, %155 : vector<2x8x128xf32>
    %157 = arith.addf %12, %156 : vector<2x8x128xf32>
    %cst_62 = arith.constant 0.000000e+00 : f32
    %158 = vector.broadcast %cst_62 : f32 to vector<2x8x128xf32>
    %159 = arith.cmpf ogt, %7, %158 : vector<2x8x128xf32>
    %160 = arith.extui %159 : vector<2x8x128xi1> to vector<2x8x128xi32>
    %161 = arith.sitofp %160 : vector<2x8x128xi32> to vector<2x8x128xf32>
    %cst_63 = arith.constant 0.000000e+00 : f32
    %162 = vector.broadcast %cst_63 : f32 to vector<2x8x128xf32>
    %163 = arith.cmpf oeq, %7, %162 : vector<2x8x128xf32>
    %164 = arith.extui %163 : vector<2x8x128xi1> to vector<2x8x128xi32>
    %165 = arith.sitofp %164 : vector<2x8x128xi32> to vector<2x8x128xf32>
    %166 = arith.mulf %157, %165 : vector<2x8x128xf32>
    %167 = tpu.bitcast %166 : vector<2x8x128xf32> -> vector<2x8x128xi32>
    %c0_64 = arith.constant 0 : index
    %c0_65 = arith.constant 0 : index
    %c0_66 = arith.constant 0 : index
    %168 = vector.load %arg6[%c0_64, %c0_65, %c0_66] : memref<2x8x128xi32, #tpu.memory_space<vmem>>, vector<2x8x128xi32>
    tpu.vector_store %arg6[%c0_64, %c0_65, %c0_66], %167 {strides = array<i32>} : memref<2x8x128xi32, #tpu.memory_space<vmem>>, vector<2x8x128xi32>,
    %cst_67 = arith.constant dense<0.000000e+00> : vector<8x128xf32>
    %169 = vector.multi_reduction <add>, %157, %cst_67 [0] : vector<2x8x128xf32> to vector<8x128xf32>
    %c0_68 = arith.constant 0 : index
    %c0_69 = arith.constant 0 : index
    %170 = vector.load %arg7[%c0_68, %c0_69] : memref<8x128xf32, #tpu.memory_space<vmem>>, vector<8x128xf32>
    tpu.vector_store %arg7[%c0_68, %c0_69], %169 {strides = array<i32>} : memref<8x128xf32, #tpu.memory_space<vmem>>, vector<8x128xf32>,
    %c0_70 = arith.constant 0 : index
    %c0_71 = arith.constant 0 : index
    %c0_72 = arith.constant 0 : index
    %171 = vector.load %arg8[%c0_70, %c0_71, %c0_72] : memref<2x1x128xf32, #tpu.memory_space<vmem>>, vector<2x1x128xf32>
    %cst_73 = arith.constant dense<0.000000e+00> : vector<2x128xf32>
    %172 = vector.multi_reduction <add>, %161, %cst_73 [1] : vector<2x8x128xf32> to vector<2x128xf32>
    %173 = vector.shape_cast %172 : vector<2x128xf32> to vector<2x1x128xf32>
    %174 = arith.addf %171, %173 : vector<2x1x128xf32>
    %c0_74 = arith.constant 0 : index
    %c0_75 = arith.constant 0 : index
    %c0_76 = arith.constant 0 : index
    %175 = vector.load %arg8[%c0_74, %c0_75, %c0_76] : memref<2x1x128xf32, #tpu.memory_space<vmem>>, vector<2x1x128xf32>
    tpu.vector_store %arg8[%c0_74, %c0_75, %c0_76], %174 {strides = array<i32>} : memref<2x1x128xf32, #tpu.memory_space<vmem>>, vector<2x1x128xf32>,
    %c0_77 = arith.constant 0 : index
    %c0_78 = arith.constant 0 : index
    %c0_79 = arith.constant 0 : index
    %176 = vector.load %arg9[%c0_77, %c0_78, %c0_79] : memref<2x1x128xf32, #tpu.memory_space<vmem>>, vector<2x1x128xf32>
    %cst_80 = arith.constant dense<0.000000e+00> : vector<2x128xf32>
    %177 = vector.multi_reduction <add>, %165, %cst_80 [1] : vector<2x8x128xf32> to vector<2x128xf32>
    %178 = vector.shape_cast %177 : vector<2x128xf32> to vector<2x1x128xf32>
    %179 = arith.addf %176, %178 : vector<2x1x128xf32>
    %c0_81 = arith.constant 0 : index
    %c0_82 = arith.constant 0 : index
    %c0_83 = arith.constant 0 : index
    %180 = vector.load %arg9[%c0_81, %c0_82, %c0_83] : memref<2x1x128xf32, #tpu.memory_space<vmem>>, vector<2x1x128xf32>
    tpu.vector_store %arg9[%c0_81, %c0_82, %c0_83], %179 {strides = array<i32>} : memref<2x1x128xf32, #tpu.memory_space<vmem>>, vector<2x1x128xf32>,
    %c0_84 = arith.constant 0 : index
    %c0_85 = arith.constant 0 : index
    %c0_86 = arith.constant 0 : index
    %181 = vector.load %arg10[%c0_84, %c0_85, %c0_86] : memref<2x1x128xf32, #tpu.memory_space<vmem>>, vector<2x1x128xf32>
    %182 = arith.mulf %157, %7 : vector<2x8x128xf32>
    %cst_87 = arith.constant dense<0.000000e+00> : vector<2x128xf32>
    %183 = vector.multi_reduction <add>, %182, %cst_87 [1] : vector<2x8x128xf32> to vector<2x128xf32>
    %184 = vector.shape_cast %183 : vector<2x128xf32> to vector<2x1x128xf32>
    %185 = arith.addf %181, %184 : vector<2x1x128xf32>
    %c0_88 = arith.constant 0 : index
    %c0_89 = arith.constant 0 : index
    %c0_90 = arith.constant 0 : index
    %186 = vector.load %arg10[%c0_88, %c0_89, %c0_90] : memref<2x1x128xf32, #tpu.memory_space<vmem>>, vector<2x1x128xf32>
    tpu.vector_store %arg10[%c0_88, %c0_89, %c0_90], %185 {strides = array<i32>} : memref<2x1x128xf32, #tpu.memory_space<vmem>>, vector<2x1x128xf32>,
    %c0_91 = arith.constant 0 : index
    %c0_92 = arith.constant 0 : index
    %c0_93 = arith.constant 0 : index
    %187 = vector.load %arg11[%c0_91, %c0_92, %c0_93] : memref<2x1x128xf32, #tpu.memory_space<vmem>>, vector<2x1x128xf32>
    %cst_94 = arith.constant dense<0.000000e+00> : vector<2x128xf32>
    %188 = vector.multi_reduction <add>, %7, %cst_94 [1] : vector<2x8x128xf32> to vector<2x128xf32>
    %189 = vector.shape_cast %188 : vector<2x128xf32> to vector<2x1x128xf32>
    %190 = arith.addf %187, %189 : vector<2x1x128xf32>
    %c0_95 = arith.constant 0 : index
    %c0_96 = arith.constant 0 : index
    %c0_97 = arith.constant 0 : index
    %191 = vector.load %arg11[%c0_95, %c0_96, %c0_97] : memref<2x1x128xf32, #tpu.memory_space<vmem>>, vector<2x1x128xf32>
    tpu.vector_store %arg11[%c0_95, %c0_96, %c0_97], %190 {strides = array<i32>} : memref<2x1x128xf32, #tpu.memory_space<vmem>>, vector<2x1x128xf32>,
    return
  }
  func.func @transform_0(%arg0: i32) -> (i32, i32, i32) {
    %c0_i32 = arith.constant 0 : i32
    %c0_i32_0 = arith.constant 0 : i32
    %c0_i32_1 = arith.constant 0 : i32
    return %c0_i32, %arg0, %c0_i32_0 : i32, i32, i32
  }
  func.func @transform_1(%arg0: i32) -> (i32, i32, i32) {
    %c0_i32 = arith.constant 0 : i32
    %c0_i32_0 = arith.constant 0 : i32
    %c0_i32_1 = arith.constant 0 : i32
    return %c0_i32, %arg0, %c0_i32_0 : i32, i32, i32
  }
  func.func @transform_2(%arg0: i32) -> (i32, i32, i32) {
    %c0_i32 = arith.constant 0 : i32
    %c0_i32_0 = arith.constant 0 : i32
    %c0_i32_1 = arith.constant 0 : i32
    return %c0_i32, %arg0, %c0_i32_0 : i32, i32, i32
  }
  func.func @transform_3(%arg0: i32) -> (i32, i32, i32) {
    %c0_i32 = arith.constant 0 : i32
    %c0_i32_0 = arith.constant 0 : i32
    %c0_i32_1 = arith.constant 0 : i32
    return %c0_i32, %arg0, %c0_i32_0 : i32, i32, i32
  }
  func.func @transform_4(%arg0: i32) -> (i32, i32, i32) {
    %c0_i32 = arith.constant 0 : i32
    %c0_i32_0 = arith.constant 0 : i32
    %c0_i32_1 = arith.constant 0 : i32
    return %c0_i32, %arg0, %c0_i32_0 : i32, i32, i32
  }
  func.func @transform_5(%arg0: i32) -> (i32, i32, i32) {
    %c0_i32 = arith.constant 0 : i32
    %c0_i32_0 = arith.constant 0 : i32
    %c0_i32_1 = arith.constant 0 : i32
    return %c0_i32, %arg0, %c0_i32_0 : i32, i32, i32
  }
  func.func @transform_6(%arg0: i32) -> (i32, i32) {
    %c0_i32 = arith.constant 0 : i32
    %c0_i32_0 = arith.constant 0 : i32
    return %arg0, %c0_i32 : i32, i32
  }
  func.func @transform_7(%arg0: i32) -> (i32, i32, i32) {
    %c0_i32 = arith.constant 0 : i32
    %c0_i32_0 = arith.constant 0 : i32
    %c0_i32_1 = arith.constant 0 : i32
    %c0_i32_2 = arith.constant 0 : i32
    return %c0_i32, %c0_i32_0, %c0_i32_1 : i32, i32, i32
  }
  func.func @transform_8(%arg0: i32) -> (i32, i32, i32) {
    %c0_i32 = arith.constant 0 : i32
    %c0_i32_0 = arith.constant 0 : i32
    %c0_i32_1 = arith.constant 0 : i32
    %c0_i32_2 = arith.constant 0 : i32
    return %c0_i32, %c0_i32_0, %c0_i32_1 : i32, i32, i32
  }
  func.func @transform_9(%arg0: i32) -> (i32, i32, i32) {
    %c0_i32 = arith.constant 0 : i32
    %c0_i32_0 = arith.constant 0 : i32
    %c0_i32_1 = arith.constant 0 : i32
    %c0_i32_2 = arith.constant 0 : i32
    return %c0_i32, %c0_i32_0, %c0_i32_1 : i32, i32, i32
  }
  func.func @transform_10(%arg0: i32) -> (i32, i32, i32) {
    %c0_i32 = arith.constant 0 : i32
    %c0_i32_0 = arith.constant 0 : i32
    %c0_i32_1 = arith.constant 0 : i32
    %c0_i32_2 = arith.constant 0 : i32
    return %c0_i32, %c0_i32_0, %c0_i32_1 : i32, i32, i32
  }
}

module attributes {stable_mosaic.version = 11 : i64} {
  func.func @_pass2_kernel(%arg0: memref<2x8x128xi32, #tpu.memory_space<vmem>>, %arg1: memref<8x128xf32, #tpu.memory_space<vmem>>, %arg2: memref<2x1x128xf32, #tpu.memory_space<vmem>>, %arg3: memref<2x1x128xf32, #tpu.memory_space<vmem>>, %arg4: memref<2x1x128xf32, #tpu.memory_space<vmem>>, %arg5: memref<2x1x128xf32, #tpu.memory_space<vmem>>, %arg6: memref<1x1xf32, #tpu.memory_space<smem>>) attributes {dimension_semantics = [], scalar_prefetch = 0 : i64, scratch_operands = 0 : i64, tpu.core_type = #tpu.core_type<tc>} {
    %c0 = arith.constant 0 : index
    %c0_0 = arith.constant 0 : index
    %c0_1 = arith.constant 0 : index
    %0 = vector.load %arg2[%c0, %c0_0, %c0_1] : memref<2x1x128xf32, #tpu.memory_space<vmem>>, vector<2x1x128xf32>
    %cst = arith.constant dense<0.000000e+00> : vector<2x1xf32>
    %1 = vector.multi_reduction <add>, %0, %cst [2] : vector<2x1x128xf32> to vector<2x1xf32>
    %2 = vector.shape_cast %1 : vector<2x1xf32> to vector<2x1x1xf32>
    %c0_2 = arith.constant 0 : index
    %c0_3 = arith.constant 0 : index
    %c0_4 = arith.constant 0 : index
    %3 = vector.load %arg3[%c0_2, %c0_3, %c0_4] : memref<2x1x128xf32, #tpu.memory_space<vmem>>, vector<2x1x128xf32>
    %cst_5 = arith.constant dense<0.000000e+00> : vector<2x1xf32>
    %4 = vector.multi_reduction <add>, %3, %cst_5 [2] : vector<2x1x128xf32> to vector<2x1xf32>
    %5 = vector.shape_cast %4 : vector<2x1xf32> to vector<2x1x1xf32>
    %c0_6 = arith.constant 0 : index
    %c0_7 = arith.constant 0 : index
    %c0_8 = arith.constant 0 : index
    %6 = vector.load %arg4[%c0_6, %c0_7, %c0_8] : memref<2x1x128xf32, #tpu.memory_space<vmem>>, vector<2x1x128xf32>
    %7 = vector.shape_cast %6 : vector<2x1x128xf32> to vector<1x2x1x128xf32>
    %cst_9 = arith.constant dense<0.000000e+00> : vector<1xf32>
    %8 = vector.multi_reduction <add>, %7, %cst_9 [1, 2, 3] : vector<1x2x1x128xf32> to vector<1xf32>
    %9 = vector.shape_cast %8 : vector<1xf32> to vector<1x1x1x1xf32>
    %10 = vector.extract %9[0, 0, 0, 0] : f32 from vector<1x1x1x1xf32>
    %c0_10 = arith.constant 0 : index
    %c0_11 = arith.constant 0 : index
    %c0_12 = arith.constant 0 : index
    %11 = vector.load %arg5[%c0_10, %c0_11, %c0_12] : memref<2x1x128xf32, #tpu.memory_space<vmem>>, vector<2x1x128xf32>
    %12 = vector.shape_cast %11 : vector<2x1x128xf32> to vector<1x2x1x128xf32>
    %cst_13 = arith.constant dense<0.000000e+00> : vector<1xf32>
    %13 = vector.multi_reduction <add>, %12, %cst_13 [1, 2, 3] : vector<1x2x1x128xf32> to vector<1xf32>
    %14 = vector.shape_cast %13 : vector<1xf32> to vector<1x1x1x1xf32>
    %15 = vector.extract %14[0, 0, 0, 0] : f32 from vector<1x1x1x1xf32>
    %cst_14 = arith.constant 3.000000e+00 : f32
    %16 = vector.broadcast %cst_14 : f32 to vector<2x1x1xf32>
    %17 = arith.mulf %16, %2 : vector<2x1x1xf32>
    %18 = arith.minimumf %17, %5 : vector<2x1x1xf32>
    %cst_15 = arith.constant 1.000000e+00 : f32
    %19 = vector.broadcast %cst_15 : f32 to vector<2x1x1xf32>
    %20 = arith.maximumf %18, %19 : vector<2x1x1xf32>
    %c0_i32 = arith.constant 0 : i32
    %21 = vector.broadcast %c0_i32 : i32 to vector<2x1x1xi32>
    %c2139095041_i32 = arith.constant 2139095041 : i32
    %22 = vector.broadcast %c2139095041_i32 : i32 to vector<2x1x1xi32>
    %c0_i32_16 = arith.constant 0 : i32
    %c32_i32 = arith.constant 32 : i32
    %23 = arith.addi %c0_i32_16, %c32_i32 : i32
    %c1_i32 = arith.constant 1 : i32
    %24:2 = scf.for %arg7 = %c0_i32_16 to %23 step %c1_i32 iter_args(%arg8 = %21, %arg9 = %22) -> (vector<2x1x1xi32>, vector<2x1x1xi32>)  : i32 {
      %85 = arith.subi %arg9, %arg8 : vector<2x1x1xi32>
      %c1_i32_42 = arith.constant 1 : i32
      %86 = vector.broadcast %c1_i32_42 : i32 to vector<2x1x1xi32>
      %87 = arith.shrsi %85, %86 : vector<2x1x1xi32>
      %88 = arith.addi %arg8, %87 : vector<2x1x1xi32>
      %c0_43 = arith.constant 0 : index
      %c0_44 = arith.constant 0 : index
      %c0_45 = arith.constant 0 : index
      %89 = vector.load %arg0[%c0_43, %c0_44, %c0_45] : memref<2x8x128xi32, #tpu.memory_space<vmem>>, vector<2x8x128xi32>
      %90 = vector.broadcast %88 : vector<2x1x1xi32> to vector<2x8x128xi32>
      %91 = arith.cmpi sge, %89, %90 : vector<2x8x128xi32>
      %92 = arith.extui %91 : vector<2x8x128xi1> to vector<2x8x128xi32>
      %93 = arith.sitofp %92 : vector<2x8x128xi32> to vector<2x8x128xf32>
      %cst_46 = arith.constant dense<0.000000e+00> : vector<2x8xf32>
      %94 = vector.multi_reduction <add>, %93, %cst_46 [2] : vector<2x8x128xf32> to vector<2x8xf32>
      %95 = vector.shape_cast %94 : vector<2x8xf32> to vector<2x8x1xf32>
      %cst_47 = arith.constant dense<0.000000e+00> : vector<2x1xf32>
      %96 = vector.multi_reduction <add>, %95, %cst_47 [1] : vector<2x8x1xf32> to vector<2x1xf32>
      %97 = vector.shape_cast %96 : vector<2x1xf32> to vector<2x1x1xf32>
      %98 = arith.cmpf oge, %97, %20 : vector<2x1x1xf32>
      %99 = arith.select %98, %88, %arg8 : vector<2x1x1xi1>, vector<2x1x1xi32>
      %100 = arith.select %98, %arg9, %88 : vector<2x1x1xi1>, vector<2x1x1xi32>
      scf.yield %99, %100 : vector<2x1x1xi32>, vector<2x1x1xi32>
    }
    %c1_i32_17 = arith.constant 1 : i32
    %25 = vector.broadcast %c1_i32_17 : i32 to vector<2x1x1xi32>
    %26 = arith.addi %24#0, %25 : vector<2x1x1xi32>
    %c0_18 = arith.constant 0 : index
    %c0_19 = arith.constant 0 : index
    %c0_20 = arith.constant 0 : index
    %27 = vector.load %arg0[%c0_18, %c0_19, %c0_20] : memref<2x8x128xi32, #tpu.memory_space<vmem>>, vector<2x8x128xi32>
    %28 = vector.broadcast %26 : vector<2x1x1xi32> to vector<2x8x128xi32>
    %29 = arith.cmpi sge, %27, %28 : vector<2x8x128xi32>
    %30 = arith.extui %29 : vector<2x8x128xi1> to vector<2x8x128xi32>
    %31 = arith.sitofp %30 : vector<2x8x128xi32> to vector<2x8x128xf32>
    %cst_21 = arith.constant dense<0.000000e+00> : vector<2x8xf32>
    %32 = vector.multi_reduction <add>, %31, %cst_21 [2] : vector<2x8x128xf32> to vector<2x8xf32>
    %33 = vector.shape_cast %32 : vector<2x8xf32> to vector<2x8x1xf32>
    %cst_22 = arith.constant dense<0.000000e+00> : vector<2x1xf32>
    %34 = vector.multi_reduction <add>, %33, %cst_22 [1] : vector<2x8x1xf32> to vector<2x1xf32>
    %35 = vector.shape_cast %34 : vector<2x1xf32> to vector<2x1x1xf32>
    %36 = arith.subf %20, %35 : vector<2x1x1xf32>
    %37 = tpu.iota {dimensions = array<i32: 0>} : vector<8x128xi32>
    %38 = tpu.iota {dimensions = array<i32: 1>} : vector<8x128xi32>
    %c128_i32 = arith.constant 128 : i32
    %39 = vector.broadcast %c128_i32 : i32 to vector<8x128xi32>
    %40 = arith.muli %37, %39 : vector<8x128xi32>
    %41 = arith.addi %40, %38 : vector<8x128xi32>
    %c0_i32_23 = arith.constant 0 : i32
    %42 = vector.broadcast %c0_i32_23 : i32 to vector<2x1x1xi32>
    %c1024_i32 = arith.constant 1024 : i32
    %43 = vector.broadcast %c1024_i32 : i32 to vector<2x1x1xi32>
    %c0_i32_24 = arith.constant 0 : i32
    %c11_i32 = arith.constant 11 : i32
    %44 = arith.addi %c0_i32_24, %c11_i32 : i32
    %c1_i32_25 = arith.constant 1 : i32
    %45:2 = scf.for %arg7 = %c0_i32_24 to %44 step %c1_i32_25 iter_args(%arg8 = %42, %arg9 = %43) -> (vector<2x1x1xi32>, vector<2x1x1xi32>)  : i32 {
      %85 = arith.subi %arg9, %arg8 : vector<2x1x1xi32>
      %c1_i32_42 = arith.constant 1 : i32
      %86 = vector.broadcast %c1_i32_42 : i32 to vector<2x1x1xi32>
      %87 = arith.shrsi %85, %86 : vector<2x1x1xi32>
      %88 = arith.addi %arg8, %87 : vector<2x1x1xi32>
      %c0_43 = arith.constant 0 : index
      %c0_44 = arith.constant 0 : index
      %c0_45 = arith.constant 0 : index
      %89 = vector.load %arg0[%c0_43, %c0_44, %c0_45] : memref<2x8x128xi32, #tpu.memory_space<vmem>>, vector<2x8x128xi32>
      %90 = vector.broadcast %24#0 : vector<2x1x1xi32> to vector<2x8x128xi32>
      %91 = arith.cmpi eq, %89, %90 : vector<2x8x128xi32>
      %92 = vector.shape_cast %41 : vector<8x128xi32> to vector<1x8x128xi32>
      %93 = vector.broadcast %92 : vector<1x8x128xi32> to vector<2x8x128xi32>
      %94 = vector.broadcast %88 : vector<2x1x1xi32> to vector<2x8x128xi32>
      %95 = arith.cmpi sge, %93, %94 : vector<2x8x128xi32>
      %96 = arith.andi %91, %95 : vector<2x8x128xi1>
      %97 = arith.extui %96 : vector<2x8x128xi1> to vector<2x8x128xi32>
      %98 = arith.sitofp %97 : vector<2x8x128xi32> to vector<2x8x128xf32>
      %cst_46 = arith.constant dense<0.000000e+00> : vector<2x8xf32>
      %99 = vector.multi_reduction <add>, %98, %cst_46 [2] : vector<2x8x128xf32> to vector<2x8xf32>
      %100 = vector.shape_cast %99 : vector<2x8xf32> to vector<2x8x1xf32>
      %cst_47 = arith.constant dense<0.000000e+00> : vector<2x1xf32>
      %101 = vector.multi_reduction <add>, %100, %cst_47 [1] : vector<2x8x1xf32> to vector<2x1xf32>
      %102 = vector.shape_cast %101 : vector<2x1xf32> to vector<2x1x1xf32>
      %103 = arith.cmpf oge, %102, %36 : vector<2x1x1xf32>
      %104 = arith.select %103, %88, %arg8 : vector<2x1x1xi1>, vector<2x1x1xi32>
      %105 = arith.select %103, %arg9, %88 : vector<2x1x1xi1>, vector<2x1x1xi32>
      scf.yield %104, %105 : vector<2x1x1xi32>, vector<2x1x1xi32>
    }
    %c0_26 = arith.constant 0 : index
    %c0_27 = arith.constant 0 : index
    %c0_28 = arith.constant 0 : index
    %46 = vector.load %arg0[%c0_26, %c0_27, %c0_28] : memref<2x8x128xi32, #tpu.memory_space<vmem>>, vector<2x8x128xi32>
    %47 = vector.broadcast %24#0 : vector<2x1x1xi32> to vector<2x8x128xi32>
    %48 = arith.cmpi sgt, %46, %47 : vector<2x8x128xi32>
    %49 = vector.broadcast %24#0 : vector<2x1x1xi32> to vector<2x8x128xi32>
    %50 = arith.cmpi eq, %46, %49 : vector<2x8x128xi32>
    %51 = vector.shape_cast %41 : vector<8x128xi32> to vector<1x8x128xi32>
    %52 = vector.broadcast %51 : vector<1x8x128xi32> to vector<2x8x128xi32>
    %53 = vector.broadcast %45#0 : vector<2x1x1xi32> to vector<2x8x128xi32>
    %54 = arith.cmpi sge, %52, %53 : vector<2x8x128xi32>
    %55 = arith.andi %50, %54 : vector<2x8x128xi1>
    %56 = arith.ori %48, %55 : vector<2x8x128xi1>
    %cst_29 = arith.constant 0.000000e+00 : f32
    %57 = vector.broadcast %cst_29 : f32 to vector<2x1x1xf32>
    %58 = arith.cmpf ole, %18, %57 : vector<2x1x1xf32>
    %59 = vector.broadcast %58 : vector<2x1x1xi1> to vector<2x8x128xi1>
    %60 = arith.ori %56, %59 : vector<2x8x128xi1>
    %c0_i32_30 = arith.constant 0 : i32
    %61 = vector.broadcast %c0_i32_30 : i32 to vector<2x8x128xi32>
    %62 = arith.cmpi ne, %46, %61 : vector<2x8x128xi32>
    %63 = arith.andi %60, %62 : vector<2x8x128xi1>
    %64 = arith.extui %63 : vector<2x8x128xi1> to vector<2x8x128xi32>
    %65 = arith.sitofp %64 : vector<2x8x128xi32> to vector<2x8x128xf32>
    %cst_31 = arith.constant dense<0.000000e+00> : vector<8x128xf32>
    %66 = vector.multi_reduction <add>, %65, %cst_31 [0] : vector<2x8x128xf32> to vector<8x128xf32>
    %c0_32 = arith.constant 0 : index
    %c0_33 = arith.constant 0 : index
    %67 = vector.load %arg1[%c0_32, %c0_33] : memref<8x128xf32, #tpu.memory_space<vmem>>, vector<8x128xf32>
    %68 = arith.mulf %67, %66 : vector<8x128xf32>
    %69 = vector.shape_cast %68 : vector<8x128xf32> to vector<1x8x128xf32>
    %cst_34 = arith.constant dense<0.000000e+00> : vector<1xf32>
    %70 = vector.multi_reduction <add>, %69, %cst_34 [1, 2] : vector<1x8x128xf32> to vector<1xf32>
    %71 = vector.shape_cast %70 : vector<1xf32> to vector<1x1x1xf32>
    %72 = vector.extract %71[0, 0, 0] : f32 from vector<1x1x1xf32>
    %73 = vector.shape_cast %65 : vector<2x8x128xf32> to vector<1x2x8x128xf32>
    %cst_35 = arith.constant dense<0.000000e+00> : vector<1xf32>
    %74 = vector.multi_reduction <add>, %73, %cst_35 [1, 2, 3] : vector<1x2x8x128xf32> to vector<1xf32>
    %75 = vector.shape_cast %74 : vector<1xf32> to vector<1x1x1x1xf32>
    %76 = vector.extract %75[0, 0, 0, 0] : f32 from vector<1x1x1x1xf32>
    %cst_36 = arith.constant 2.000000e+00 : f32
    %77 = arith.mulf %cst_36, %10 : f32
    %78 = arith.addf %77, %72 : f32
    %79 = arith.addf %15, %76 : f32
    %cst_37 = arith.constant 2.000000e+00 : f32
    %80 = arith.mulf %cst_37, %79 : f32
    %cst_38 = arith.constant 2.000000e+00 : f32
    %81 = arith.divf %78, %cst_38 : f32
    %cst_39 = arith.constant 2.000000e+00 : f32
    %82 = arith.divf %81, %cst_39 : f32
    %83 = arith.divf %82, %80 : f32
    %c0_40 = arith.constant 0 : index
    %c0_41 = arith.constant 0 : index
    %84 = memref.load %arg6[%c0_40, %c0_41] : memref<1x1xf32, #tpu.memory_space<smem>>
    memref.store %83, %arg6[%c0_40, %c0_41] : memref<1x1xf32, #tpu.memory_space<smem>>
    return
  }
}

</mosaic_0001>

<llo_original>
// kernel: squeeze.7
$region0: #{squeeze.7}
  %s0 = inlined_call_operand.vmem [shape: f32[2,1,16,16], index: 0, kind: input, shape index: {}]
  %s1 = inlined_call_operand.vmem [shape: f32[2,256], index: 1, kind: output, shape index: {}]
  $region1: #{squeeze.7} parent=0
    #allocation0 [shape = 'u8[8192]{0}', space=vmem, size = 0x2000, scoped, tag = 'scoped mem for output reshape']
    %v2 = vld [vmem:[%s0] ss:$8 sm:$0xf]
    %vm3 = vcmask 130048
    %4 = vst.msk [vmem:[#allocation0] ss:$8 sm:$0x3] %vm3, %v2
    %s5 = scalar_lea.vmem [#allocation0], 4294967281
    %6 = vst.msk [vmem:[%s5] ss:$8 sm:$0xc] %vm3, %v2
    %s7 = scalar_lea.vmem %s0, 7
    %s8 = smov 3
    %v9 = vld [vmem:[%s7] ss:$16 sm:%s8]
    %s10 = scalar_lea.vmem %s0, 4294967279
    %s11 = smov 12
    %v12 = vld [vmem:[%s10] ss:$16 sm:%s11]
    %vm13 = vcmask 1043458
    %v14 = vsel %vm13, %v12, %v9
    %15 = vrot.lane.b32.xlu0 %v14, 112
    %v16 = vpop.permute.xlu0 %15
    %vm17 = vcmask 1048448
    %18 = vst.msk [vmem:[#allocation0] sm:$0x3] %vm17, %v16
    %s19 = scalar_lea.vmem [#allocation0], 6
    %20 = vst.msk [vmem:[%s19] sm:$0xc] %vm17, %v16
    %s21 = scalar_lea.vmem %s0, 6
    %s22 = smov 3
    %v23 = vld [vmem:[%s21] ss:$16 sm:%s22]
    %s24 = scalar_lea.vmem %s0, 4294967278
    %s25 = smov 12
    %v26 = vld [vmem:[%s24] ss:$16 sm:%s25]
    %vm27 = vcmask 1043458
    %v28 = vsel %vm27, %v26, %v23
    %29 = vrot.lane.b32.xlu0 %v28, 96
    %v30 = vpop.permute.xlu0 %29
    %vm31 = vcmask 917248
    %32 = vst.msk [vmem:[#allocation0] sm:$0x3] %vm31, %v30
    %s33 = scalar_lea.vmem [#allocation0], 6
    %34 = vst.msk [vmem:[%s33] sm:$0xc] %vm31, %v30
    %s35 = scalar_lea.vmem %s0, 5
    %s36 = smov 3
    %v37 = vld [vmem:[%s35] ss:$16 sm:%s36]
    %s38 = scalar_lea.vmem %s0, 4294967277
    %s39 = smov 12
    %v40 = vld [vmem:[%s38] ss:$16 sm:%s39]
    %vm41 = vcmask 1043458
    %v42 = vsel %vm41, %v40, %v37
    %43 = vrot.lane.b32.xlu0 %v42, 80
    %v44 = vpop.permute.xlu0 %43
    %vm45 = vcmask 786048
    %46 = vst.msk [vmem:[#allocation0] sm:$0x3] %vm45, %v44
    %s47 = scalar_lea.vmem [#allocation0], 6
    %48 = vst.msk [vmem:[%s47] sm:$0xc] %vm45, %v44
    %s49 = scalar_lea.vmem %s0, 4
    %s50 = smov 3
    %v51 = vld [vmem:[%s49] ss:$16 sm:%s50]
    %s52 = scalar_lea.vmem %s0, 4294967276
    %s53 = smov 12
    %v54 = vld [vmem:[%s52] ss:$16 sm:%s53]
    %vm55 = vcmask 1043458
    %v56 = vsel %vm55, %v54, %v51
    %57 = vrot.lane.b32.xlu0 %v56, 64
    %v58 = vpop.permute.xlu0 %57
    %vm59 = vcmask 654848
    %60 = vst.msk [vmem:[#allocation0] sm:$0x3] %vm59, %v58
    %s61 = scalar_lea.vmem [#allocation0], 6
    %62 = vst.msk [vmem:[%s61] sm:$0xc] %vm59, %v58
    %s63 = scalar_lea.vmem %s0, 3
    %s64 = smov 3
    %v65 = vld [vmem:[%s63] ss:$16 sm:%s64]
    %s66 = scalar_lea.vmem %s0, 4294967275
    %s67 = smov 12
    %v68 = vld [vmem:[%s66] ss:$16 sm:%s67]
    %vm69 = vcmask 1043458
    %v70 = vsel %vm69, %v68, %v65
    %71 = vrot.lane.b32.xlu0 %v70, 48
    %v72 = vpop.permute.xlu0 %71
    %vm73 = vcmask 523648
    %74 = vst.msk [vmem:[#allocation0] sm:$0x3] %vm73, %v72
    %s75 = scalar_lea.vmem [#allocation0], 6
    %76 = vst.msk [vmem:[%s75] sm:$0xc] %vm73, %v72
    %s77 = scalar_lea.vmem %s0, 2
    %s78 = smov 3
    %v79 = vld [vmem:[%s77] ss:$16 sm:%s78]
    %s80 = scalar_lea.vmem %s0, 4294967274
    %s81 = smov 12
    %v82 = vld [vmem:[%s80] ss:$16 sm:%s81]
    %vm83 = vcmask 1043458
    %v84 = vsel %vm83, %v82, %v79
    %85 = vrot.lane.b32.xlu0 %v84, 32
    %v86 = vpop.permute.xlu0 %85
    %vm87 = vcmask 392448
    %88 = vst.msk [vmem:[#allocation0] sm:$0x3] %vm87, %v86
    %s89 = scalar_lea.vmem [#allocation0], 6
    %90 = vst.msk [vmem:[%s89] sm:$0xc] %vm87, %v86
    %s91 = scalar_lea.vmem %s0, 1
    %s92 = smov 3
    %v93 = vld [vmem:[%s91] ss:$16 sm:%s92]
    %s94 = scalar_lea.vmem %s0, 4294967273
    %s95 = smov 12
    %v96 = vld [vmem:[%s94] ss:$16 sm:%s95]
    %vm97 = vcmask 1043458
    %v98 = vsel %vm97, %v96, %v93
    %99 = vrot.lane.b32.xlu0 %v98, 16
    %v100 = vpop.permute.xlu0 %99
    %vm101 = vcmask 261248
    %102 = vst.msk [vmem:[#allocation0] sm:$0x3] %vm101, %v100
    %s103 = scalar_lea.vmem [#allocation0], 6
    %104 = vst.msk [vmem:[%s103] sm:$0xc] %vm101, %v100
    %s106 = ssub.s32 4, 1
    %v107 = vld [vmem:[#allocation0] sm:%s106]
    %s109 = ssub.s32 4, 1
    %110 = vst [vmem:[%s1] sm:%s109] %v107
    %s111 = scalar_lea.vmem [#allocation0], 8
    %v112 = vld [vmem:[%s111] sm:%s106]
    %s114 = ssub.s32 4, 1
    %s115 = scalar_lea.vmem %s1, 2
    %116 = vst [vmem:[%s115] sm:%s114] %v112

// kernel: euclidean_angle_loss_with_ohem.3
$region0: #{euclidean_angle_loss_with_ohem.3}
  #allocation0 [shape = 'u32[]', space=smem, size = 0x4, offset = 0x4, fixed_abs, tag = 'smem constant byte address 0x4 - core index']
  #allocation1 [shape = 'u32[72,128]{1,0:T(1,128)}', space=vmem, size = 0x9000, scoped, tag = 'internal scratch']
  %s0 = inlined_call_operand.vmem [shape: s32[2,8,128], index: 0, kind: input, shape index: {}]
  %s1 = inlined_call_operand.vmem [shape: f32[8,128], index: 1, kind: input, shape index: {}]
  %s2 = inlined_call_operand.vmem [shape: f32[2,1,128], index: 2, kind: input, shape index: {}]
  %s3 = inlined_call_operand.vmem [shape: f32[2,1,128], index: 3, kind: input, shape index: {}]
  %s4 = inlined_call_operand.vmem [shape: f32[2,1,128], index: 4, kind: input, shape index: {}]
  %s5 = inlined_call_operand.vmem [shape: f32[2,1,128], index: 5, kind: input, shape index: {}]
  %s6 = inlined_call_operand.hbm [shape: f32[1,1], index: 6, kind: output, shape index: {}]
  %s7 = sld [smem:[#allocation0]]
  $region48: #{euclidean_angle_loss_with_ohem.3} parent=0
    _
  %s9 = ssub.s32 1, %s7
  %s10 = scalar_select 0, %s9, %s7
  $region1: #{euclidean_angle_loss_with_ohem.3} parent=0
    #allocation2 [shape = 'u8[512]{0}', space=smem, size = 0x200, scoped, tag = 'output window, operand 0, single buffered']
    #allocation3 [shape = 's32[1]{0}', space=sflag, size = 0x4, scoped, tag = 'scoped memory for euclidean_angle_loss_with_ohem.3']
    %11 = vsyncpa [#allocation3], 0
    // Predicated region
    $region2: #{euclidean_angle_loss_with_ohem.3} parent=1 // pred_check
      _
    $region3: #{euclidean_angle_loss_with_ohem.3} parent=1 // pred_check_branch
      %13 = sbr.rel (0) target = $region5
    $region4: #{euclidean_angle_loss_with_ohem.3} parent=1 // pred_region
      _
    $region5: #{euclidean_angle_loss_with_ohem.3} parent=1 // pred_fallthru
      _
    // Predicated region
    $region6: #{euclidean_angle_loss_with_ohem.3} parent=1 // pred_check
      _
    $region7: #{euclidean_angle_loss_with_ohem.3} parent=1 // pred_check_branch
      %15 = sbr.rel (0) target = $region9
    $region8: #{euclidean_angle_loss_with_ohem.3} parent=1 // pred_region
      _
    $region9: #{euclidean_angle_loss_with_ohem.3} parent=1 // pred_fallthru
      _
    // Predicated region
    $region10: #{euclidean_angle_loss_with_ohem.3} parent=1 // pred_check
      _
    $region11: #{euclidean_angle_loss_with_ohem.3} parent=1 // pred_check_branch
      %17 = sbr.rel (0) target = $region13
    $region12: #{euclidean_angle_loss_with_ohem.3} parent=1 // pred_region
      _
    $region13: #{euclidean_angle_loss_with_ohem.3} parent=1 // pred_fallthru
      _
    // Predicated region
    $region14: #{euclidean_angle_loss_with_ohem.3} parent=1 // pred_check
      _
    $region15: #{euclidean_angle_loss_with_ohem.3} parent=1 // pred_check_branch
      %19 = sbr.rel (0) target = $region17
    $region16: #{euclidean_angle_loss_with_ohem.3} parent=1 // pred_region
      _
    $region17: #{euclidean_angle_loss_with_ohem.3} parent=1 // pred_fallthru
      _
    // Predicated region
    $region18: #{euclidean_angle_loss_with_ohem.3} parent=1 // pred_check
      _
    $region19: #{euclidean_angle_loss_with_ohem.3} parent=1 // pred_check_branch
      %21 = sbr.rel (0) target = $region21
    $region20: #{euclidean_angle_loss_with_ohem.3} parent=1 // pred_region
      _
    $region21: #{euclidean_angle_loss_with_ohem.3} parent=1 // pred_fallthru
      _
    // Predicated region
    $region22: #{euclidean_angle_loss_with_ohem.3} parent=1 // pred_check
      _
    $region23: #{euclidean_angle_loss_with_ohem.3} parent=1 // pred_check_branch
      %23 = sbr.rel (0) target = $region25
    $region24: #{euclidean_angle_loss_with_ohem.3} parent=1 // pred_region
      _
    $region25: #{euclidean_angle_loss_with_ohem.3} parent=1 // pred_fallthru
      _
    %v24 = vld [vmem:[%s2] sm:$0x1]
    %v25 = vld [vmem:[%s2 + $0x1] sm:$0x1]
    %vm26 = vcmask 1040384
    %v27 = vsel %vm26, %v24, 0.0
    %28 = vadd.xlane.f32.xlu0 %v27
    %v29 = vpop.xlane.xlu0 %28
    %v30 = vsel %vm26, %v25, 0.0
    %31 = vadd.xlane.f32.xlu0 %v30
    %v32 = vpop.xlane.xlu0 %31
    %v33 = vld [vmem:[%s3] sm:$0x1]
    %v34 = vld [vmem:[%s3 + $0x1] sm:$0x1]
    %v35 = vsel %vm26, %v33, 0.0
    %36 = vadd.xlane.f32.xlu0 %v35
    %v37 = vpop.xlane.xlu0 %36
    %v38 = vsel %vm26, %v34, 0.0
    %39 = vadd.xlane.f32.xlu0 %v38
    %v40 = vpop.xlane.xlu0 %39
    %v41 = vld [vmem:[%s4] sm:$0x1]
    %v42 = vld [vmem:[%s4 + $0x1] sm:$0x1]
    %v43 = vsel %vm26, %v41, 0.0
    %v44 = vsel %vm26, %v42, 0.0
    %v45 = vadd.f32 %v43, %v44
    %46 = vadd.xlane.f32.xlu0 %v45
    %v47 = vpop.xlane.xlu0 %46
    %v48 = vrot.slane %v47, 4
    %v49 = vadd.f32 %v47, %v48
    %v50 = vrot.slane %v49, 2
    %v51 = vadd.f32 %v49, %v50
    %v52 = vrot.slane %v51, 1
    %v53 = vadd.f32 %v51, %v52
    %s54 = vtos %v53
    %v55 = vld [vmem:[%s5] sm:$0x1]
    %v56 = vld [vmem:[%s5 + $0x1] sm:$0x1]
    %v57 = vsel %vm26, %v55, 0.0
    %v58 = vsel %vm26, %v56, 0.0
    %v59 = vadd.f32 %v57, %v58
    %60 = vadd.xlane.f32.xlu0 %v59
    %v61 = vpop.xlane.xlu0 %60
    %v62 = vrot.slane %v61, 4
    %v63 = vadd.f32 %v61, %v62
    %v64 = vrot.slane %v63, 2
    %v65 = vadd.f32 %v63, %v64
    %v66 = vrot.slane %v65, 1
    %v67 = vadd.f32 %v65, %v66
    %s68 = vtos %v67
    %v69 = vmul.f32 %v29, 3.0
    %v70 = vmul.f32 %v32, 3.0
    %v71 = vmin.f32 %v69, %v37
    %v72 = vmin.f32 %v70, %v40
    %v73 = vmax.f32 %v71, 1.0
    %v74 = vmax.f32 %v72, 1.0
    loop: start=0, step=1, limit=32
    $region26: #{euclidean_angle_loss_with_ohem.3} parent=1 // loop_pre_header
      _
    $region27: #{euclidean_angle_loss_with_ohem.3} parent=1 // loop_header
      %s76 = sphi 0, %s80
      %p77 = scmp.ge.s32.totalorder %s76, 32
      %v81 = vphi 0, %v119
      %v82 = vphi 0, %v120
      %v83 = vphi 2139095041, %v121
      %v84 = vphi 2139095041, %v122
    $region28: #{euclidean_angle_loss_with_ohem.3} parent=1 // loop_header_branch
      %79 = sbr.rel (%p77) target = $region32
    $region29: #{euclidean_angle_loss_with_ohem.3} parent=1 // loop_body
      %v85 = vsub.s32 %v83, %v81
      %v86 = vsub.s32 %v84, %v82
      %v87 = vshra.s32 %v85, 1
      %v88 = vshra.s32 %v86, 1
      %v89 = vadd.s32 %v81, %v87
      %v90 = vadd.s32 %v82, %v88
      %v91 = vld [vmem:[%s0] sm:$0xff]
      %v92 = vld [vmem:[%s0 + $0x8] sm:$0xff]
      %v93 = vperm.slane %v89, 0
      %v94 = vperm.slane %v90, 0
      %vm95 = vcmp.ge.s32.totalorder %v91, %v93
      %vm96 = vcmp.ge.s32.totalorder %v92, %v94
      %v97 = vsel %vm95, 1, 0
      %v98 = vsel %vm96, 1, 0
      %v99 = vcvt.s32.f32 %v97
      %v100 = vcvt.s32.f32 %v98
      %101 = vadd.xlane.f32.xlu0 %v99
      %v102 = vpop.xlane.xlu0 %101
      %103 = vadd.xlane.f32.xlu0 %v100
      %v104 = vpop.xlane.xlu0 %103
      %v105 = vrot.slane %v102, 4
      %v106 = vadd.f32 %v102, %v105
      %v107 = vrot.slane %v106, 2
      %v108 = vadd.f32 %v106, %v107
      %v109 = vrot.slane %v108, 1
      %v110 = vadd.f32 %v108, %v109
      %v111 = vrot.slane %v104, 4
      %v112 = vadd.f32 %v104, %v111
      %v113 = vrot.slane %v112, 2
      %v114 = vadd.f32 %v112, %v113
      %v115 = vrot.slane %v114, 1
      %v116 = vadd.f32 %v114, %v115
      %vm117 = vcmp.ge.f32.partialorder %v110, %v73
      %vm118 = vcmp.ge.f32.partialorder %v116, %v74
      %v119 = vsel %vm117, %v89, %v81
      %v120 = vsel %vm118, %v90, %v82
      %v121 = vsel %vm117, %v83, %v89
      %v122 = vsel %vm118, %v84, %v90
    $region30: #{euclidean_angle_loss_with_ohem.3} parent=1 // loop_footer
      %s80 = sadd.s32 1, %s76
    $region31: #{euclidean_angle_loss_with_ohem.3} parent=1 // loop_footer_branch
      %75 = sbr.rel target = $region27
    $region32: #{euclidean_angle_loss_with_ohem.3} parent=1 // loop_exit
      _
    %v123 = vadd.s32 %v81, 1
    %v124 = vadd.s32 %v82, 1
    %v125 = vld [vmem:[%s0] sm:$0xff]
    %v126 = vld [vmem:[%s0 + $0x8] sm:$0xff]
    %v127 = vperm.slane %v123, 0
    %v128 = vperm.slane %v124, 0
    %vm129 = vcmp.ge.s32.totalorder %v125, %v127
    %vm130 = vcmp.ge.s32.totalorder %v126, %v128
    %v131 = vsel %vm129, 1, 0
    %v132 = vsel %vm130, 1, 0
    %v133 = vcvt.s32.f32 %v131
    %v134 = vcvt.s32.f32 %v132
    %135 = vadd.xlane.f32.xlu0 %v133
    %v136 = vpop.xlane.xlu0 %135
    %137 = vadd.xlane.f32.xlu0 %v134
    %v138 = vpop.xlane.xlu0 %137
    %v139 = vrot.slane %v136, 4
    %v140 = vadd.f32 %v136, %v139
    %v141 = vrot.slane %v140, 2
    %v142 = vadd.f32 %v140, %v141
    %v143 = vrot.slane %v142, 1
    %v144 = vadd.f32 %v142, %v143
    %v145 = vrot.slane %v138, 4
    %v146 = vadd.f32 %v138, %v145
    %v147 = vrot.slane %v146, 2
    %v148 = vadd.f32 %v146, %v147
    %v149 = vrot.slane %v148, 1
    %v150 = vadd.f32 %v148, %v149
    %v151 = vsub.f32 %v73, %v144
    %v152 = vsub.f32 %v74, %v150
    %v153 = vlaneseq
    %v154 = vshrl.u32 %v153, 7
    %v155 = vlaneseq
    %v156 = vand.u32 %v155, 127
    %v157 = vmul.u32 %v154, 128
    %v158 = vadd.s32 %v157, %v156
    loop: start=0, step=1, limit=11
    $region33: #{euclidean_angle_loss_with_ohem.3} parent=1 // loop_pre_header
      _
    $region34: #{euclidean_angle_loss_with_ohem.3} parent=1 // loop_header
      %s160 = sphi 0, %s164
      %p161 = scmp.ge.s32.totalorder %s160, 11
      %v165 = vphi 0, %v209
      %v166 = vphi 0, %v210
      %v167 = vphi 1024, %v211
      %v168 = vphi 1024, %v212
    $region35: #{euclidean_angle_loss_with_ohem.3} parent=1 // loop_header_branch
      %163 = sbr.rel (%p161) target = $region39
    $region36: #{euclidean_angle_loss_with_ohem.3} parent=1 // loop_body
      %v169 = vsub.s32 %v167, %v165
      %v170 = vsub.s32 %v168, %v166
      %v171 = vshra.s32 %v169, 1
      %v172 = vshra.s32 %v170, 1
      %v173 = vadd.s32 %v165, %v171
      %v174 = vadd.s32 %v166, %v172
      %v175 = vld [vmem:[%s0] sm:$0xff]
      %v176 = vld [vmem:[%s0 + $0x8] sm:$0xff]
      %v177 = vperm.slane %v81, 0
      %v178 = vperm.slane %v82, 0
      %vm179 = vcmp.eq.s32.totalorder %v175, %v177
      %vm180 = vcmp.eq.s32.totalorder %v176, %v178
      %v181 = vperm.slane %v173, 0
      %v182 = vperm.slane %v174, 0
      %vm183 = vcmp.ge.s32.totalorder %v158, %v181
      %vm184 = vcmp.ge.s32.totalorder %v158, %v182
      %vm185 = vmand %vm179, %vm183
      %vm186 = vmand %vm180, %vm184
      %v187 = vsel %vm185, 1, 0
      %v188 = vsel %vm186, 1, 0
      %v189 = vcvt.s32.f32 %v187
      %v190 = vcvt.s32.f32 %v188
      %191 = vadd.xlane.f32.xlu0 %v189
      %v192 = vpop.xlane.xlu0 %191
      %193 = vadd.xlane.f32.xlu0 %v190
      %v194 = vpop.xlane.xlu0 %193
      %v195 = vrot.slane %v192, 4
      %v196 = vadd.f32 %v192, %v195
      %v197 = vrot.slane %v196, 2
      %v198 = vadd.f32 %v196, %v197
      %v199 = vrot.slane %v198, 1
      %v200 = vadd.f32 %v198, %v199
      %v201 = vrot.slane %v194, 4
      %v202 = vadd.f32 %v194, %v201
      %v203 = vrot.slane %v202, 2
      %v204 = vadd.f32 %v202, %v203
      %v205 = vrot.slane %v204, 1
      %v206 = vadd.f32 %v204, %v205
      %vm207 = vcmp.ge.f32.partialorder %v200, %v151
      %vm208 = vcmp.ge.f32.partialorder %v206, %v152
      %v209 = vsel %vm207, %v173, %v165
      %v210 = vsel %vm208, %v174, %v166
      %v211 = vsel %vm207, %v167, %v173
      %v212 = vsel %vm208, %v168, %v174
    $region37: #{euclidean_angle_loss_with_ohem.3} parent=1 // loop_footer
      %s164 = sadd.s32 1, %s160
    $region38: #{euclidean_angle_loss_with_ohem.3} parent=1 // loop_footer_branch
      %159 = sbr.rel target = $region34
    $region39: #{euclidean_angle_loss_with_ohem.3} parent=1 // loop_exit
      _
    %v213 = vperm.slane %v81, 0
    %v214 = vperm.slane %v82, 0
    %vm215 = vcmp.gt.s32.totalorder %v125, %v213
    %vm216 = vcmp.gt.s32.totalorder %v126, %v214
    %vm217 = vcmp.eq.s32.totalorder %v125, %v213
    %vm218 = vcmp.eq.s32.totalorder %v126, %v214
    %v219 = vperm.slane %v165, 0
    %v220 = vperm.slane %v166, 0
    %vm221 = vcmp.ge.s32.totalorder %v158, %v219
    %vm222 = vcmp.ge.s32.totalorder %v158, %v220
    %vm223 = vmand %vm217, %vm221
    %vm224 = vmand %vm218, %vm222
    %vm225 = vmor %vm215, %vm223
    %vm226 = vmor %vm216, %vm224
    %vm227 = vcmp.le.f32.partialorder %v71, 0.0
    %vm228 = vcmp.le.f32.partialorder %v72, 0.0
    %v229 = vsel %vm227, 1, 0
    %v230 = vsel %vm228, 1, 0
    %v231 = vperm.slane %v229, 0
    %v232 = vperm.slane %v230, 0
    %vm233 = vcmp.eq.s32.totalorder %v231, 1
    %vm234 = vcmp.eq.s32.totalorder %v232, 1
    %vm235 = vmor %vm225, %vm233
    %vm236 = vmor %vm226, %vm234
    %vm237 = vcmp.ne.s32.totalorder %v125, 0
    %vm238 = vcmp.ne.s32.totalorder %v126, 0
    %vm239 = vmand %vm235, %vm237
    %vm240 = vmand %vm236, %vm238
    %v241 = vsel %vm239, 1, 0
    %v242 = vsel %vm240, 1, 0
    %v243 = vcvt.s32.f32 %v241
    %v244 = vcvt.s32.f32 %v242
    %v245 = vadd.f32 %v243, %v244
    %v246 = vld [vmem:[%s1] sm:$0xff]
    %v247 = vmul.f32 %v246, %v245
    %248 = vadd.xlane.f32.xlu0 %v247
    %v249 = vpop.xlane.xlu0 %248
    %v250 = vrot.slane %v249, 4
    %v251 = vadd.f32 %v249, %v250
    %v252 = vrot.slane %v251, 2
    %v253 = vadd.f32 %v251, %v252
    %v254 = vrot.slane %v253, 1
    %v255 = vadd.f32 %v253, %v254
    %s256 = vtos %v255
    %257 = vadd.xlane.f32.xlu0 %v245
    %v258 = vpop.xlane.xlu0 %257
    %v259 = vrot.slane %v258, 4
    %v260 = vadd.f32 %v258, %v259
    %v261 = vrot.slane %v260, 2
    %v262 = vadd.f32 %v260, %v261
    %v263 = vrot.slane %v262, 1
    %v264 = vadd.f32 %v262, %v263
    %s265 = vtos %v264
    %s266 = smul.f32 %s54, 2.0
    %s267 = sadd.f32 %s266, %s256
    %s268 = sadd.f32 %s68, %s265
    %s269 = smul.f32 %s268, 2.0
    %v270 = vrcp.pop 2.0
    %v271 = vmul.f32 2.0, %v270
    %v272 = vsub.f32 1.0, %v271
    %v273 = vmul.f32 %v270, %v272
    %v274 = vadd.f32 %v270, %v273
    %vm275 = vweird.f32 %v270
    %v276 = vsel %vm275, %v270, %v274
    %s277 = vtos %v276
    %s278 = smul.f32 %s267, %s277
    %v279 = vrcp.pop 2.0
    %v280 = vmul.f32 2.0, %v279
    %v281 = vsub.f32 1.0, %v280
    %v282 = vmul.f32 %v279, %v281
    %v283 = vadd.f32 %v279, %v282
    %vm284 = vweird.f32 %v279
    %v285 = vsel %vm284, %v279, %v283
    %s286 = vtos %v285
    %s287 = smul.f32 %s278, %s286
    %v288 = vstv %s269
    %v289 = vrcp.pop %v288
    %v290 = vmul.f32 %v288, %v289
    %v291 = vsub.f32 1.0, %v290
    %v292 = vmul.f32 %v289, %v291
    %v293 = vadd.f32 %v289, %v292
    %vm294 = vweird.f32 %v288
    %vm295 = vweird.f32 %v289
    %vm296 = vmor %vm294, %vm295
    %v297 = vsel %vm296, %v289, %v293
    %v298 = vand.u32 2147483647, %v288
    %vm299 = vcmp.eq.f32.partialorder %v298, 8.507059e+37
    %v300 = vand.u32 %v288, 2147483648
    %v301 = vor.u32 1.1754944e-38, %v300
    %v302 = vsel %vm299, %v301, %v297
    %s303 = vtos %v302
    %s304 = smul.f32 %s287, %s303
    %s305 = scalar_lea.smem [#allocation2], 0
    %306 = sst [smem:[%s305]] %s304
    // Predicated region
    $region40: #{euclidean_angle_loss_with_ohem.3} parent=1 // pred_check
      _
    $region41: #{euclidean_angle_loss_with_ohem.3} parent=1 // pred_check_branch
      %308 = sbr.rel (0) target = $region43
    $region42: #{euclidean_angle_loss_with_ohem.3} parent=1 // pred_region
      %310 = vsyncadd [#allocation3], 0
      %s312 = sshll.u32 %s6, 4
      %s313 = int_to_ptr.hbm [resolvable:$true] %s312
      %315 = dma.smem_to_hbm [#allocation2], 16, %s313, [#allocation3]
    $region43: #{euclidean_angle_loss_with_ohem.3} parent=1 // pred_fallthru
      _
    // Predicated region
    $region44: #{euclidean_angle_loss_with_ohem.3} parent=1 // pred_check
      _
    $region45: #{euclidean_angle_loss_with_ohem.3} parent=1 // pred_check_branch
      %317 = sbr.rel (0) target = $region47
    $region46: #{euclidean_angle_loss_with_ohem.3} parent=1 // pred_region
      %319 = dma.done [#allocation3], 16
    $region47: #{euclidean_angle_loss_with_ohem.3} parent=1 // pred_fallthru
      _
    %320 = sfence
    %321 = vsyncpa [#allocation3], 1

// kernel: euclidean_angle_loss_with_ohem.2
$region0: #{euclidean_angle_loss_with_ohem.2}
  #allocation0 [shape = 'u32[]', space=smem, size = 0x4, offset = 0x4, fixed_abs, tag = 'smem constant byte address 0x4 - core index']
  #allocation1 [shape = 'u32[72,128]{1,0:T(1,128)}', space=vmem, size = 0x9000, scoped, tag = 'internal scratch']
  %s0 = inlined_call_operand.vmem [shape: f32[2,8,128], index: 0, kind: input, shape index: {}]
  %s1 = inlined_call_operand.vmem [shape: f32[2,8,128], index: 1, kind: input, shape index: {}]
  %s2 = inlined_call_operand.vmem [shape: f32[2,8,128], index: 2, kind: input, shape index: {}]
  %s3 = inlined_call_operand.vmem [shape: f32[2,8,128], index: 3, kind: input, shape index: {}]
  %s4 = inlined_call_operand.vmem [shape: f32[2,8,128], index: 4, kind: input, shape index: {}]
  %s5 = inlined_call_operand.vmem [shape: s32[2,8,128], index: 5, kind: output, shape index: {0}]
  %s6 = inlined_call_operand.vmem [shape: f32[8,128], index: 6, kind: output, shape index: {1}]
  %s7 = inlined_call_operand.vmem [shape: f32[2,1,128], index: 7, kind: output, shape index: {2}]
  %s8 = inlined_call_operand.vmem [shape: f32[2,1,128], index: 8, kind: output, shape index: {3}]
  %s9 = inlined_call_operand.vmem [shape: f32[2,1,128], index: 9, kind: output, shape index: {4}]
  %s10 = inlined_call_operand.vmem [shape: f32[2,1,128], index: 10, kind: output, shape index: {5}]
  %11 = xla_tuple %s5, %s6, %s7, %s8, %s9, %s10
  %s12 = sld [smem:[#allocation0]]
  $region74: #{euclidean_angle_loss_with_ohem.2} parent=0
    _
  %s14 = ssub.s32 1, %s12
  %s15 = scalar_select 0, %s14, %s12
  // Predicated region
  $region2: #{euclidean_angle_loss_with_ohem.2} parent=0 // pred_check
    _
  $region3: #{euclidean_angle_loss_with_ohem.2} parent=0 // pred_check_branch
    %17 = sbr.rel (0) target = $region5
  $region4: #{euclidean_angle_loss_with_ohem.2} parent=0 // pred_region
    _
  $region5: #{euclidean_angle_loss_with_ohem.2} parent=0 // pred_fallthru
    _
  // Predicated region
  $region6: #{euclidean_angle_loss_with_ohem.2} parent=0 // pred_check
    _
  $region7: #{euclidean_angle_loss_with_ohem.2} parent=0 // pred_check_branch
    %19 = sbr.rel (0) target = $region9
  $region8: #{euclidean_angle_loss_with_ohem.2} parent=0 // pred_region
    _
  $region9: #{euclidean_angle_loss_with_ohem.2} parent=0 // pred_fallthru
    _
  // Predicated region
  $region10: #{euclidean_angle_loss_with_ohem.2} parent=0 // pred_check
    _
  $region11: #{euclidean_angle_loss_with_ohem.2} parent=0 // pred_check_branch
    %21 = sbr.rel (0) target = $region13
  $region12: #{euclidean_angle_loss_with_ohem.2} parent=0 // pred_region
    _
  $region13: #{euclidean_angle_loss_with_ohem.2} parent=0 // pred_fallthru
    _
  // Predicated region
  $region14: #{euclidean_angle_loss_with_ohem.2} parent=0 // pred_check
    _
  $region15: #{euclidean_angle_loss_with_ohem.2} parent=0 // pred_check_branch
    %23 = sbr.rel (0) target = $region17
  $region16: #{euclidean_angle_loss_with_ohem.2} parent=0 // pred_region
    _
  $region17: #{euclidean_angle_loss_with_ohem.2} parent=0 // pred_fallthru
    _
  // Predicated region
  $region18: #{euclidean_angle_loss_with_ohem.2} parent=0 // pred_check
    _
  $region19: #{euclidean_angle_loss_with_ohem.2} parent=0 // pred_check_branch
    %25 = sbr.rel (0) target = $region21
  $region20: #{euclidean_angle_loss_with_ohem.2} parent=0 // pred_region
    _
  $region21: #{euclidean_angle_loss_with_ohem.2} parent=0 // pred_fallthru
    _
  %p26 = scmp.eq.s32.totalorder 0, 0
  // Predicated region
  $region22: #{euclidean_angle_loss_with_ohem.2} parent=0 // pred_check
    %p27 = pneg %p26
  $region23: #{euclidean_angle_loss_with_ohem.2} parent=0 // pred_check_branch
    %29 = sbr.rel (%p27) target = $region25
  $region24: #{euclidean_angle_loss_with_ohem.2} parent=0 // pred_region
    %30 = vst [vmem:[%s7] sm:$0x1] 0.0
    %31 = vst [vmem:[%s7 + $0x1] sm:$0x1] 0.0
    %32 = vst [vmem:[%s8] sm:$0x1] 0.0
    %33 = vst [vmem:[%s8 + $0x1] sm:$0x1] 0.0
    %34 = vst [vmem:[%s9] sm:$0x1] 0.0
    %35 = vst [vmem:[%s9 + $0x1] sm:$0x1] 0.0
    %36 = vst [vmem:[%s10] sm:$0x1] 0.0
    %37 = vst [vmem:[%s10 + $0x1] sm:$0x1] 0.0
  $region25: #{euclidean_angle_loss_with_ohem.2} parent=0 // pred_fallthru
    _
  %v38 = vld [vmem:[%s0] sm:$0xff]
  %v39 = vld [vmem:[%s0 + $0x8] sm:$0xff]
  %v40 = vld [vmem:[%s1] sm:$0xff]
  %v41 = vld [vmem:[%s1 + $0x8] sm:$0xff]
  %v42 = vld [vmem:[%s2] sm:$0xff]
  %v43 = vld [vmem:[%s2 + $0x8] sm:$0xff]
  %v44 = vld [vmem:[%s3] sm:$0xff]
  %v45 = vld [vmem:[%s3 + $0x8] sm:$0xff]
  %v46 = vld [vmem:[%s4] sm:$0xff]
  %v47 = vld [vmem:[%s4 + $0x8] sm:$0xff]
  %v48 = vsub.f32 %v38, %v42
  %v49 = vsub.f32 %v39, %v43
  %v50 = vsub.f32 %v40, %v44
  %v51 = vsub.f32 %v41, %v45
  %v52 = vmul.f32 %v48, %v48
  %v53 = vmul.f32 %v49, %v49
  %v54 = vmul.f32 %v50, %v50
  %v55 = vmul.f32 %v51, %v51
  %v56 = vadd.f32 %v52, %v54
  %v57 = vadd.f32 %v53, %v55
  %v58 = vadd.f32 %v42, 1e-12
  %v59 = vadd.f32 %v43, 1e-12
  %v60 = vrcp.pop %v58
  %v61 = vrcp.pop %v59
  %v62 = vmul.f32 %v44, %v60
  %v63 = vmul.f32 %v45, %v61
  %vm64 = vcmp.lt.f32.partialorder %v62, 0.0
  %vm65 = vcmp.lt.f32.partialorder %v63, 0.0
  %v66 = vsel %vm64, -1.0, 1.0
  %v67 = vsel %vm65, -1.0, 1.0
  %v68 = vand.u32 2147483647, %v62
  %v69 = vand.u32 2147483647, %v63
  %vm70 = vcmp.gt.f32.partialorder %v68, 2.4142137
  %vm71 = vcmp.gt.f32.partialorder %v69, 2.4142137
  %vm72 = vcmp.gt.f32.partialorder %v68, 0.41421357
  %vm73 = vcmp.gt.f32.partialorder %v69, 0.41421357
  %vm74 = vmxor %vm70, 1
  %vm75 = vmxor %vm71, 1
  %vm76 = vmand %vm72, %vm74
  %vm77 = vmand %vm73, %vm75
  %v78 = vsel %vm76, 0.7853982, 0.0
  %v79 = vsel %vm77, 0.7853982, 0.0
  %v80 = vsel %vm70, 1.5707964, %v78
  %v81 = vsel %vm71, 1.5707964, %v79
  %v82 = vsel %vm70, %v68, 1.0
  %v83 = vsel %vm71, %v69, 1.0
  %v84 = vrcp.pop %v82
  %v85 = vrcp.pop %v83
  %v86 = vsub.f32 0.0, %v84
  %v87 = vsub.f32 0.0, %v85
  %v88 = vsub.f32 %v68, 1.0
  %v89 = vsub.f32 %v69, 1.0
  %v90 = vadd.f32 %v68, 1.0
  %v91 = vadd.f32 %v69, 1.0
  %v92 = vrcp.pop %v90
  %v93 = vrcp.pop %v91
  %v94 = vmul.f32 %v88, %v92
  %v95 = vmul.f32 %v89, %v93
  %v96 = vsel %vm76, %v94, %v68
  %v97 = vsel %vm77, %v95, %v69
  %v98 = vsel %vm70, %v86, %v96
  %v99 = vsel %vm71, %v87, %v97
  %v100 = vmul.f32 %v98, %v98
  %v101 = vmul.f32 %v99, %v99
  %v102 = vmul.f32 %v100, 0.080537446
  %v103 = vmul.f32 %v101, 0.080537446
  %v104 = vsub.f32 %v102, 0.13877685
  %v105 = vsub.f32 %v103, 0.13877685
  %v106 = vmul.f32 %v104, %v100
  %v107 = vmul.f32 %v105, %v101
  %v108 = vadd.f32 %v106, 0.19977711
  %v109 = vadd.f32 %v107, 0.19977711
  %v110 = vmul.f32 %v108, %v100
  %v111 = vmul.f32 %v109, %v101
  %v112 = vsub.f32 %v110, 0.3333295
  %v113 = vsub.f32 %v111, 0.3333295
  %v114 = vmul.f32 %v112, %v100
  %v115 = vmul.f32 %v113, %v101
  %v116 = vmul.f32 %v114, %v98
  %v117 = vmul.f32 %v115, %v99
  %v118 = vadd.f32 %v80, %v116
  %v119 = vadd.f32 %v81, %v117
  %v120 = vadd.f32 %v118, %v98
  %v121 = vadd.f32 %v119, %v99
  %v122 = vmul.f32 %v66, %v120
  %v123 = vmul.f32 %v67, %v121
  %vm124 = vcmp.lt.f32.partialorder %v42, 0.0
  %vm125 = vcmp.lt.f32.partialorder %v43, 0.0
  %v126 = vsel %vm124, 1, 0
  %v127 = vsel %vm125, 1, 0
  %v128 = vcvt.s32.f32 %v126
  %v129 = vcvt.s32.f32 %v127
  %v130 = vmul.f32 %v128, 3.1415927
  %v131 = vmul.f32 %v129, 3.1415927
  %v132 = vadd.f32 %v122, %v130
  %v133 = vadd.f32 %v123, %v131
  %vm134 = vcmp.gt.f32.partialorder %v42, 0.0
  %vm135 = vcmp.gt.f32.partialorder %v43, 0.0
  %v136 = vsel %vm134, 1, 0
  %v137 = vsel %vm135, 1, 0
  %v138 = vcvt.s32.f32 %v136
  %v139 = vcvt.s32.f32 %v137
  %vm140 = vcmp.lt.f32.partialorder %v44, 0.0
  %vm141 = vcmp.lt.f32.partialorder %v45, 0.0
  %v142 = vsel %vm140, 1, 0
  %v143 = vsel %vm141, 1, 0
  %v144 = vcvt.s32.f32 %v142
  %v145 = vcvt.s32.f32 %v143
  %v146 = vmul.f32 %v138, %v144
  %v147 = vmul.f32 %v139, %v145
  %v148 = vmul.f32 %v146, 6.2831855
  %v149 = vmul.f32 %v147, 6.2831855
  %v150 = vadd.f32 %v132, %v148
  %v151 = vadd.f32 %v133, %v149
  %v152 = vmul.f32 %v150, 0.15915494
  %v153 = vmul.f32 %v151, 0.15915494
  %v154 = vadd.f32 %v38, 1e-12
  %v155 = vadd.f32 %v39, 1e-12
  %v156 = vrcp.pop %v154
  %v157 = vrcp.pop %v155
  %v158 = vmul.f32 %v40, %v156
  %v159 = vmul.f32 %v41, %v157
  %vm160 = vcmp.lt.f32.partialorder %v158, 0.0
  %vm161 = vcmp.lt.f32.partialorder %v159, 0.0
  %v162 = vsel %vm160, -1.0, 1.0
  %v163 = vsel %vm161, -1.0, 1.0
  %v164 = vand.u32 2147483647, %v158
  %v165 = vand.u32 2147483647, %v159
  %vm166 = vcmp.gt.f32.partialorder %v164, 2.4142137
  %vm167 = vcmp.gt.f32.partialorder %v165, 2.4142137
  %vm168 = vcmp.gt.f32.partialorder %v164, 0.41421357
  %vm169 = vcmp.gt.f32.partialorder %v165, 0.41421357
  %vm170 = vmxor %vm166, 1
  %vm171 = vmxor %vm167, 1
  %vm172 = vmand %vm168, %vm170
  %vm173 = vmand %vm169, %vm171
  %v174 = vsel %vm172, 0.7853982, 0.0
  %v175 = vsel %vm173, 0.7853982, 0.0
  %v176 = vsel %vm166, 1.5707964, %v174
  %v177 = vsel %vm167, 1.5707964, %v175
  %v178 = vsel %vm166, %v164, 1.0
  %v179 = vsel %vm167, %v165, 1.0
  %v180 = vrcp.pop %v178
  %v181 = vrcp.pop %v179
  %v182 = vsub.f32 0.0, %v180
  %v183 = vsub.f32 0.0, %v181
  %v184 = vsub.f32 %v164, 1.0
  %v185 = vsub.f32 %v165, 1.0
  %v186 = vadd.f32 %v164, 1.0
  %v187 = vadd.f32 %v165, 1.0
  %v188 = vrcp.pop %v186
  %v189 = vrcp.pop %v187
  %v190 = vmul.f32 %v184, %v188
  %v191 = vmul.f32 %v185, %v189
  %v192 = vsel %vm172, %v190, %v164
  %v193 = vsel %vm173, %v191, %v165
  %v194 = vsel %vm166, %v182, %v192
  %v195 = vsel %vm167, %v183, %v193
  %v196 = vmul.f32 %v194, %v194
  %v197 = vmul.f32 %v195, %v195
  %v198 = vmul.f32 %v196, 0.080537446
  %v199 = vmul.f32 %v197, 0.080537446
  %v200 = vsub.f32 %v198, 0.13877685
  %v201 = vsub.f32 %v199, 0.13877685
  %v202 = vmul.f32 %v200, %v196
  %v203 = vmul.f32 %v201, %v197
  %v204 = vadd.f32 %v202, 0.19977711
  %v205 = vadd.f32 %v203, 0.19977711
  %v206 = vmul.f32 %v204, %v196
  %v207 = vmul.f32 %v205, %v197
  %v208 = vsub.f32 %v206, 0.3333295
  %v209 = vsub.f32 %v207, 0.3333295
  %v210 = vmul.f32 %v208, %v196
  %v211 = vmul.f32 %v209, %v197
  %v212 = vmul.f32 %v210, %v194
  %v213 = vmul.f32 %v211, %v195
  %v214 = vadd.f32 %v176, %v212
  %v215 = vadd.f32 %v177, %v213
  %v216 = vadd.f32 %v214, %v194
  %v217 = vadd.f32 %v215, %v195
  %v218 = vmul.f32 %v162, %v216
  %v219 = vmul.f32 %v163, %v217
  %vm220 = vcmp.lt.f32.partialorder %v38, 0.0
  %vm221 = vcmp.lt.f32.partialorder %v39, 0.0
  %v222 = vsel %vm220, 1, 0
  %v223 = vsel %vm221, 1, 0
  %v224 = vcvt.s32.f32 %v222
  %v225 = vcvt.s32.f32 %v223
  %v226 = vmul.f32 %v224, 3.1415927
  %v227 = vmul.f32 %v225, 3.1415927
  %v228 = vadd.f32 %v218, %v226
  %v229 = vadd.f32 %v219, %v227
  %vm230 = vcmp.gt.f32.partialorder %v38, 0.0
  %vm231 = vcmp.gt.f32.partialorder %v39, 0.0
  %v232 = vsel %vm230, 1, 0
  %v233 = vsel %vm231, 1, 0
  %v234 = vcvt.s32.f32 %v232
  %v235 = vcvt.s32.f32 %v233
  %vm236 = vcmp.lt.f32.partialorder %v40, 0.0
  %vm237 = vcmp.lt.f32.partialorder %v41, 0.0
  %v238 = vsel %vm236, 1, 0
  %v239 = vsel %vm237, 1, 0
  %v240 = vcvt.s32.f32 %v238
  %v241 = vcvt.s32.f32 %v239
  %v242 = vmul.f32 %v234, %v240
  %v243 = vmul.f32 %v235, %v241
  %v244 = vmul.f32 %v242, 6.2831855
  %v245 = vmul.f32 %v243, 6.2831855
  %v246 = vadd.f32 %v228, %v244
  %v247 = vadd.f32 %v229, %v245
  %v248 = vmul.f32 %v246, 0.15915494
  %v249 = vmul.f32 %v247, 0.15915494
  %v250 = vsub.f32 %v152, %v248
  %v251 = vsub.f32 %v153, %v249
  %v252 = vmul.f32 %v250, %v250
  %v253 = vmul.f32 %v251, %v251
  %v254 = vadd.f32 %v56, %v252
  %v255 = vadd.f32 %v57, %v253
  %vm256 = vcmp.gt.f32.partialorder %v46, 0.0
  %vm257 = vcmp.gt.f32.partialorder %v47, 0.0
  %v258 = vsel %vm256, 1, 0
  %v259 = vsel %vm257, 1, 0
  %v260 = vcvt.s32.f32 %v258
  %v261 = vcvt.s32.f32 %v259
  %vm262 = vcmp.eq.f32.partialorder %v46, 0.0
  %vm263 = vcmp.eq.f32.partialorder %v47, 0.0
  %v264 = vsel %vm262, 1, 0
  %v265 = vsel %vm263, 1, 0
  %v266 = vcvt.s32.f32 %v264
  %v267 = vcvt.s32.f32 %v265
  %v268 = vmul.f32 %v254, %v266
  %v269 = vmul.f32 %v255, %v267
  %272 = vst [vmem:[%s5] sm:$0xff] %v268
  %273 = vst [vmem:[%s5 + $0x8] sm:$0xff] %v269
  %v274 = vadd.f32 %v254, %v255
  %275 = vst [vmem:[%s6] sm:$0xff] %v274
  %v276 = vld [vmem:[%s7] sm:$0x1]
  %v277 = vld [vmem:[%s7 + $0x1] sm:$0x1]
  %v278 = vrot.slane %v260, 4
  %v279 = vadd.f32 %v260, %v278
  %v280 = vrot.slane %v279, 2
  %v281 = vadd.f32 %v279, %v280
  %v282 = vrot.slane %v281, 1
  %v283 = vadd.f32 %v281, %v282
  %v284 = vrot.slane %v261, 4
  %v285 = vadd.f32 %v261, %v284
  %v286 = vrot.slane %v285, 2
  %v287 = vadd.f32 %v285, %v286
  %v288 = vrot.slane %v287, 1
  %v289 = vadd.f32 %v287, %v288
  %v290 = vadd.f32 %v276, %v283
  %v291 = vadd.f32 %v277, %v289
  %292 = vst [vmem:[%s7] sm:$0x1] %v290
  %293 = vst [vmem:[%s7 + $0x1] sm:$0x1] %v291
  %v294 = vld [vmem:[%s8] sm:$0x1]
  %v295 = vld [vmem:[%s8 + $0x1] sm:$0x1]
  %v296 = vrot.slane %v266, 4
  %v297 = vadd.f32 %v266, %v296
  %v298 = vrot.slane %v297, 2
  %v299 = vadd.f32 %v297, %v298
  %v300 = vrot.slane %v299, 1
  %v301 = vadd.f32 %v299, %v300
  %v302 = vrot.slane %v267, 4
  %v303 = vadd.f32 %v267, %v302
  %v304 = vrot.slane %v303, 2
  %v305 = vadd.f32 %v303, %v304
  %v306 = vrot.slane %v305, 1
  %v307 = vadd.f32 %v305, %v306
  %v308 = vadd.f32 %v294, %v301
  %v309 = vadd.f32 %v295, %v307
  %310 = vst [vmem:[%s8] sm:$0x1] %v308
  %311 = vst [vmem:[%s8 + $0x1] sm:$0x1] %v309
  %v312 = vld [vmem:[%s9] sm:$0x1]
  %v313 = vld [vmem:[%s9 + $0x1] sm:$0x1]
  %v314 = vmul.f32 %v254, %v46
  %v315 = vmul.f32 %v255, %v47
  %v316 = vrot.slane %v314, 4
  %v317 = vadd.f32 %v314, %v316
  %v318 = vrot.slane %v317, 2
  %v319 = vadd.f32 %v317, %v318
  %v320 = vrot.slane %v319, 1
  %v321 = vadd.f32 %v319, %v320
  %v322 = vrot.slane %v315, 4
  %v323 = vadd.f32 %v315, %v322
  %v324 = vrot.slane %v323, 2
  %v325 = vadd.f32 %v323, %v324
  %v326 = vrot.slane %v325, 1
  %v327 = vadd.f32 %v325, %v326
  %v328 = vadd.f32 %v312, %v321
  %v329 = vadd.f32 %v313, %v327
  %330 = vst [vmem:[%s9] sm:$0x1] %v328
  %331 = vst [vmem:[%s9 + $0x1] sm:$0x1] %v329
  %v332 = vld [vmem:[%s10] sm:$0x1]
  %v333 = vld [vmem:[%s10 + $0x1] sm:$0x1]
  %v334 = vrot.slane %v46, 4
  %v335 = vadd.f32 %v46, %v334
  %v336 = vrot.slane %v335, 2
  %v337 = vadd.f32 %v335, %v336
  %v338 = vrot.slane %v337, 1
  %v339 = vadd.f32 %v337, %v338
  %v340 = vrot.slane %v47, 4
  %v341 = vadd.f32 %v47, %v340
  %v342 = vrot.slane %v341, 2
  %v343 = vadd.f32 %v341, %v342
  %v344 = vrot.slane %v343, 1
  %v345 = vadd.f32 %v343, %v344
  %v346 = vadd.f32 %v332, %v339
  %v347 = vadd.f32 %v333, %v345
  %348 = vst [vmem:[%s10] sm:$0x1] %v346
  %349 = vst [vmem:[%s10 + $0x1] sm:$0x1] %v347
  // Predicated region
  $region26: #{euclidean_angle_loss_with_ohem.2} parent=0 // pred_check
    _
  $region27: #{euclidean_angle_loss_with_ohem.2} parent=0 // pred_check_branch
    %351 = sbr.rel (0) target = $region29
  $region28: #{euclidean_angle_loss_with_ohem.2} parent=0 // pred_region
    _
  $region29: #{euclidean_angle_loss_with_ohem.2} parent=0 // pred_fallthru
    _
  // Predicated region
  $region30: #{euclidean_angle_loss_with_ohem.2} parent=0 // pred_check
    _
  $region31: #{euclidean_angle_loss_with_ohem.2} parent=0 // pred_check_branch
    %353 = sbr.rel (0) target = $region33
  $region32: #{euclidean_angle_loss_with_ohem.2} parent=0 // pred_region
    _
  $region33: #{euclidean_angle_loss_with_ohem.2} parent=0 // pred_fallthru
    _
  // Predicated region
  $region34: #{euclidean_angle_loss_with_ohem.2} parent=0 // pred_check
    _
  $region35: #{euclidean_angle_loss_with_ohem.2} parent=0 // pred_check_branch
    %355 = sbr.rel (0) target = $region37
  $region36: #{euclidean_angle_loss_with_ohem.2} parent=0 // pred_region
    _
  $region37: #{euclidean_angle_loss_with_ohem.2} parent=0 // pred_fallthru
    _
  // Predicated region
  $region38: #{euclidean_angle_loss_with_ohem.2} parent=0 // pred_check
    _
  $region39: #{euclidean_angle_loss_with_ohem.2} parent=0 // pred_check_branch
    %357 = sbr.rel (0) target = $region41
  $region40: #{euclidean_angle_loss_with_ohem.2} parent=0 // pred_region
    _
  $region41: #{euclidean_angle_loss_with_ohem.2} parent=0 // pred_fallthru
    _
  // Predicated region
  $region42: #{euclidean_angle_loss_with_ohem.2} parent=0 // pred_check
    _
  $region43: #{euclidean_angle_loss_with_ohem.2} parent=0 // pred_check_branch
    %359 = sbr.rel (0) target = $region45
  $region44: #{euclidean_angle_loss_with_ohem.2} parent=0 // pred_region
    _
  $region45: #{euclidean_angle_loss_with_ohem.2} parent=0 // pred_fallthru
    _
  // Predicated region
  $region46: #{euclidean_angle_loss_with_ohem.2} parent=0 // pred_check
    _
  $region47: #{euclidean_angle_loss_with_ohem.2} parent=0 // pred_check_branch
    %361 = sbr.rel (0) target = $region49
  $region48: #{euclidean_angle_loss_with_ohem.2} parent=0 // pred_region
    _
  $region49: #{euclidean_angle_loss_with_ohem.2} parent=0 // pred_fallthru
    _
  // Predicated region
  $region50: #{euclidean_angle_loss_with_ohem.2} parent=0 // pred_check
    _
  $region51: #{euclidean_angle_loss_with_ohem.2} parent=0 // pred_check_branch
    %363 = sbr.rel (0) target = $region53
  $region52: #{euclidean_angle_loss_with_ohem.2} parent=0 // pred_region
    _
  $region53: #{euclidean_angle_loss_with_ohem.2} parent=0 // pred_fallthru
    _
  // Predicated region
  $region54: #{euclidean_angle_loss_with_ohem.2} parent=0 // pred_check
    _
  $region55: #{euclidean_angle_loss_with_ohem.2} parent=0 // pred_check_branch
    %365 = sbr.rel (0) target = $region57
  $region56: #{euclidean_angle_loss_with_ohem.2} parent=0 // pred_region
    _
  $region57: #{euclidean_angle_loss_with_ohem.2} parent=0 // pred_fallthru
    _
  // Predicated region
  $region58: #{euclidean_angle_loss_with_ohem.2} parent=0 // pred_check
    _
  $region59: #{euclidean_angle_loss_with_ohem.2} parent=0 // pred_check_branch
    %367 = sbr.rel (0) target = $region61
  $region60: #{euclidean_angle_loss_with_ohem.2} parent=0 // pred_region
    _
  $region61: #{euclidean_angle_loss_with_ohem.2} parent=0 // pred_fallthru
    _
  // Predicated region
  $region62: #{euclidean_angle_loss_with_ohem.2} parent=0 // pred_check
    _
  $region63: #{euclidean_angle_loss_with_ohem.2} parent=0 // pred_check_branch
    %369 = sbr.rel (0) target = $region65
  $region64: #{euclidean_angle_loss_with_ohem.2} parent=0 // pred_region
    _
  $region65: #{euclidean_angle_loss_with_ohem.2} parent=0 // pred_fallthru
    _
  // Predicated region
  $region66: #{euclidean_angle_loss_with_ohem.2} parent=0 // pred_check
    _
  $region67: #{euclidean_angle_loss_with_ohem.2} parent=0 // pred_check_branch
    %371 = sbr.rel (0) target = $region69
  $region68: #{euclidean_angle_loss_with_ohem.2} parent=0 // pred_region
    _
  $region69: #{euclidean_angle_loss_with_ohem.2} parent=0 // pred_fallthru
    _
  // Predicated region
  $region70: #{euclidean_angle_loss_with_ohem.2} parent=0 // pred_check
    _
  $region71: #{euclidean_angle_loss_with_ohem.2} parent=0 // pred_check_branch
    %373 = sbr.rel (0) target = $region73
  $region72: #{euclidean_angle_loss_with_ohem.2} parent=0 // pred_region
    _
  $region73: #{euclidean_angle_loss_with_ohem.2} parent=0 // pred_fallthru
    _

</llo_original>
